<compile_context>
chip_gen: v6e
topology: v6e:2x2x1
jax: 0.10.0
libtpu: 0.0.40
codegen_flags: <defaults>
</compile_context>

<pallas_src>
import math
import functools

import jax
import jax.numpy as jnp
from jax import lax
from jax.experimental import pallas as pl
from jax.experimental.pallas import tpu as pltpu


# ----------------------------- math helpers (kernel-safe) --------------------

def _layernorm(x, g, b, eps=1e-5):
    mu = jnp.mean(x, axis=-1, keepdims=True)
    var = jnp.mean((x - mu) ** 2, axis=-1, keepdims=True)
    return (x - mu) * lax.rsqrt(var + eps) * g + b


def _gelu_tanh(x):
    # tanh-approx GELU: the transcendental goes to the EUP slot (free on v6e/v7x);
    # small numeric deviation from torch's exact-erf GELU is covered by the tolerance.
    c = math.sqrt(2.0 / math.pi)
    return 0.5 * x * (1.0 + jnp.tanh(c * (x + 0.044715 * x * x * x)))


def _bf16(x):
    return x.astype(jnp.bfloat16)


# ----------------------------- fused encoder kernel --------------------------

def encoder_kernel(x_ref, mask_ref,
                   wqkv_ref, bqkv_ref, wo_ref, bo_ref, g1_ref, be1_ref,
                   w1_ref, fb1_ref, w2_ref, fb2_ref, g2_ref, be2_ref,
                   wc1_ref, bc1_ref, wc2_ref,
                   logits_ref,
                   x_scr,
                   *, num_heads):
    """grid = (B, L): batch on the 'parallel' axis, layers on the 'arbitrary' axis.

    The activation for batch element b stays resident in VMEM scratch across the
    layer axis; the cls head runs on the last layer step only.
    """
    l = pl.program_id(1)
    num_layers = pl.num_programs(1)

    @pl.when(l == 0)
    def _():
        x_scr[...] = x_ref[0]                      # load embedded input once per b

    x = x_scr[...]                                 # [S, E] f32 (resident)
    S, E = x.shape
    H = num_heads
    hd = E // H

    valid = mask_ref[0] > 0.5                      # [S, S] window ∧ padding (precomputed)

    # --- fused QKV projection: one [S,E] @ [E,3E] MXU pass (scale folded in q cols)
    qkv = jnp.dot(_bf16(x), wqkv_ref[0],
                  preferred_element_type=jnp.float32) + bqkv_ref[0]       # [S, 3E] f32

    # head split: static lane slices stacked along a new leading (batch) axis
    def heads(off):
        return jnp.stack([qkv[:, off + h * hd: off + (h + 1) * hd] for h in range(H)],
                         axis=0)                                          # [H, S, hd]
    q, k, v = heads(0 * E), heads(1 * E), heads(2 * E)

    # --- sliding-window masked softmax attention (torch nan_to_num semantics)
    s = lax.dot_general(_bf16(q), _bf16(k),
                        dimension_numbers=(((2,), (2,)), ((0,), (0,))),
                        preferred_element_type=jnp.float32)               # [H, S, S]
    s = jnp.where(valid[None], s, -1e30)
    m = jnp.max(s, axis=-1, keepdims=True)
    e = jnp.where(valid[None], jnp.exp(s - m), 0.0)
    den = jnp.sum(e, axis=-1, keepdims=True)
    a = e * pl.reciprocal(jnp.where(den == 0.0, 1.0, den), approx=True)   # masked rows -> 0

    o_h = lax.dot_general(_bf16(a), _bf16(v),
                          dimension_numbers=(((2,), (1,)), ((0,), (0,))),
                          preferred_element_type=jnp.float32)             # [H, S, hd]

    # heads back onto lanes -> single [S,E] @ [E,E] output projection (K = E per pass)
    vals = jnp.concatenate([o_h[h] for h in range(H)], axis=-1)           # [S, E]
    attn_out = jnp.dot(_bf16(vals), wo_ref[0],
                       preferred_element_type=jnp.float32) + bo_ref[0]
    x1 = _layernorm(x + attn_out, g1_ref[0], be1_ref[0])

    # --- position-wise feed-forward + residual + LayerNorm2
    h1 = _gelu_tanh(jnp.dot(_bf16(x1), w1_ref[0],
                            preferred_element_type=jnp.float32) + fb1_ref[0])
    ff = jnp.dot(_bf16(h1), w2_ref[0],
                 preferred_element_type=jnp.float32) + fb2_ref[0]
    x2 = _layernorm(x1 + ff, g2_ref[0], be2_ref[0])

    x_scr[...] = x2                                # carry to the next layer step

    # --- classification head, emitted from the last layer step ---------------
    @pl.when(l == num_layers - 1)
    def _():
        cls = x2[0:1, :]                                                   # [1, E]
        hcls = jnp.tanh(jnp.dot(_bf16(cls), wc1_ref[...],
                                preferred_element_type=jnp.float32) + bc1_ref[...])
        logit = jnp.sum(hcls * wc2_ref[...], axis=-1, keepdims=True)       # [1, 1]
        logits_ref[...] = logit[None]                                      # [1, 1, 1]


# ----------------------------- host-side prep & wrapper ----------------------

def prepare_params(params, num_heads):
    """One-time (load-time) weight prep: layer-stack, fuse QKV, fold the attention
    scale into the q columns, and cast matmul weights to bf16."""
    E = params["layers"][0]["wq"].shape[0]
    hd = E // num_heads
    scale = 1.0 / math.sqrt(hd)

    def stack(name):
        return jnp.stack([lp[name] for lp in params["layers"]], axis=0)

    wqkv = jnp.concatenate([stack("wq") * scale, stack("wk"), stack("wv")], axis=-1)
    bqkv = jnp.concatenate([stack("bq") * scale, stack("bk"), stack("bv")], axis=-1)
    return dict(
        emb=params["emb"], pe=params["pe"],
        wqkv=_bf16(wqkv), bqkv=bqkv,                       # [L, E, 3E] / [L, 1, 3E]
        wo=_bf16(stack("wo")), bo=stack("bo"),
        g1=stack("g1"), be1=stack("be1"),
        w1=_bf16(stack("w1")), fb1=stack("fb1"),
        w2=_bf16(stack("w2")), fb2=stack("fb2"),
        g2=stack("g2"), be2=stack("be2"),
        wc1=_bf16(params["wc1"]), bc1=params["bc1"], wc2=params["wc2"],
    )


@functools.partial(jax.jit, static_argnames=("num_heads", "window_size"))
def encoder_forward_pallas(prepped, sentence, padding_mask, num_heads, window_size):
    B, S = sentence.shape
    L, E, _ = prepped["wo"].shape

    # Embedding + positional encoding (gather: plain-JAX glue under the same jit).
    x = prepped["emb"][sentence] + prepped["pe"][None, :S, :]             # [B, S, E] f32
    # TODO(synk): nn.Dropout layers are identity here (eval/inference semantics).

    # Combined sliding-window + padding mask, computed once per forward: [B, S, S].
    pm = padding_mask > 0
    idx = jnp.arange(S)
    win = jnp.abs(idx[:, None] - idx[None, :]) <= (window_size // 2)
    valid = (win[None] & pm[:, :, None] & pm[:, None, :]).astype(jnp.float32)
    # TODO(synk): at realistic S, use banded (flash-style) attention with a query-tile
    #             grid axis instead of materializing [S,S] mask/score tensors.

    weights = (prepped["wqkv"], prepped["bqkv"], prepped["wo"], prepped["bo"],
               prepped["g1"], prepped["be1"], prepped["w1"], prepped["fb1"],
               prepped["w2"], prepped["fb2"], prepped["g2"], prepped["be2"])
    cls_w = (prepped["wc1"], prepped["bc1"], prepped["wc2"])

    def layer_spec(t):                # per-layer slice, streamed along the 'arbitrary' axis
        return pl.BlockSpec((1,) + t.shape[1:],
                            lambda b, l, nd=t.ndim: (l,) + (0,) * (nd - 1))

    def const_spec(t):                # layer-invariant (cls head) weights, fetched once
        # TODO(synk): at realistic sizes mark these pipeline_mode=pl.Buffered(1)
        #             (single-buffered) to halve their VMEM footprint on v7x (64 MiB).
        return pl.BlockSpec(t.shape, lambda b, l, nd=t.ndim: (0,) * nd)

    in_specs = ([pl.BlockSpec((1, S, E), lambda b, l: (b, 0, 0)),         # x    (once per b)
                 pl.BlockSpec((1, S, S), lambda b, l: (b, 0, 0))]         # mask (once per b)
                + [layer_spec(w) for w in weights]
                + [const_spec(w) for w in cls_w])

    def nbytes(t):
        return int(t.size) * t.dtype.itemsize

    block_bytes = S * E * 4 + S * S * 4
    weight_block_bytes = (sum(nbytes(w) // L for w in weights)
                          + sum(nbytes(w) for w in cls_w))
    vmem_limit = int(max(2 * (block_bytes + weight_block_bytes) + (4 << 20), 16 << 20))

    kernel = functools.partial(encoder_kernel, num_heads=num_heads)
    logits = pl.pallas_call(
        kernel,
        grid=(B, L),
        in_specs=in_specs,
        out_specs=pl.BlockSpec((1, 1, 1), lambda b, l: (b, 0, 0)),
        out_shape=jax.ShapeDtypeStruct((B, 1, 1), jnp.float32),
        scratch_shapes=[pltpu.VMEM((S, E), jnp.float32)],
        compiler_params=pltpu.CompilerParams(
            dimension_semantics=("parallel", "arbitrary"),
            vmem_limit_bytes=vmem_limit),
    )(x, valid, *weights, *cls_w)
    return logits[:, 0, :]                                                # [B, 1]


# ----------------------------- pure-JAX reference (bf16-MXU matched) ---------

def encoder_forward_ref(params, sentence, padding_mask, num_heads, window_size):
    S = sentence.shape[1]
    x = params["emb"][sentence] + params["pe"][None, :S, :]
    pm = padding_mask.astype(jnp.float32)

    def mm(a, b):
        return jnp.dot(_bf16(a), _bf16(b), preferred_element_type=jnp.float32)

    for lp in params["layers"]:
        B_, S_, E = x.shape
        hd = E // num_heads
        scale = 1.0 / math.sqrt(hd)
        q = mm(x, lp["wq"] * scale) + lp["bq"] * scale
        k = mm(x, lp["wk"]) + lp["bk"]
        v = mm(x, lp["wv"]) + lp["bv"]
        split = lambda t: t.reshape(B_, S_, num_heads, hd).transpose(0, 2, 1, 3)
        qh, kh, vh = split(q), split(k), split(v)
        row = jnp.arange(S_)[:, None]
        col = jnp.arange(S_)[None, :]
        win = jnp.abs(row - col) <= window_size // 2
        valid = win[None, None] & (pm[:, None, :, None] > 0.5) & (pm[:, None, None, :] > 0.5)
        scores = jnp.einsum("bhid,bhjd->bhij", _bf16(qh), _bf16(kh),
                            preferred_element_type=jnp.float32)
        scores = jnp.where(valid, scores, -1e30)
        m = scores.max(-1, keepdims=True)
        e = jnp.where(valid, jnp.exp(scores - m), 0.0)
        den = e.sum(-1, keepdims=True)
        a = e / jnp.where(den == 0.0, 1.0, den)
        y = jnp.einsum("bhij,bhjd->bhid", _bf16(a), _bf16(vh),
                       preferred_element_type=jnp.float32)
        vals = y.transpose(0, 2, 1, 3).reshape(B_, S_, E)
        attn_out = mm(vals, lp["wo"]) + lp["bo"]
        x = _layernorm(x + attn_out, lp["g1"], lp["be1"])
        h1 = jax.nn.gelu(mm(x, lp["w1"]) + lp["fb1"], approximate=False)  # torch-exact GELU
        x = _layernorm(x + mm(h1, lp["w2"]) + lp["fb2"], lp["g2"], lp["be2"])
    cls_tok = x[:, 0, :]
    h = jnp.tanh(mm(cls_tok, params["wc1"]) + params["bc1"])
    return jnp.sum(h * params["wc2"], axis=-1, keepdims=True)


# ----------------------------- parameter init ---------------------------------

def init_params(key, vocab, E, H, num_layers, max_seq):
    keys = jax.random.split(key, 4 + num_layers)
    emb = 0.1 * jax.random.normal(keys[0], (vocab, E), jnp.float32)
    emb = emb.at[0].set(0.0)                         # padding_idx = 0

    pos = jnp.arange(max_seq, dtype=jnp.float32)[:, None]
    div = jnp.exp(jnp.arange(0, E, 2, dtype=jnp.float32) * (-math.log(10000.0) / E))
    pe = jnp.zeros((max_seq, E), jnp.float32)
    pe = pe.at[:, 0::2].set(jnp.sin(pos * div)).at[:, 1::2].set(jnp.cos(pos * div))

    s_e, s_h = 1.0 / math.sqrt(E), 1.0 / math.sqrt(H)
    layers = []
    for l in range(num_layers):
        k = jax.random.split(keys[3 + l], 8)
        layers.append(dict(
            wq=s_e * jax.random.normal(k[0], (E, E), jnp.float32),
            wk=s_e * jax.random.normal(k[1], (E, E), jnp.float32),
            wv=s_e * jax.random.normal(k[2], (E, E), jnp.float32),
            bq=jnp.zeros((1, E), jnp.float32),
            bk=jnp.zeros((1, E), jnp.float32),
            bv=jnp.zeros((1, E), jnp.float32),
            wo=s_e * jax.random.normal(k[3], (E, E), jnp.float32),
            bo=jnp.zeros((1, E), jnp.float32),
            g1=jnp.ones((1, E), jnp.float32), be1=jnp.zeros((1, E), jnp.float32),
            w1=s_e * jax.random.normal(k[4], (E, H), jnp.float32),
            fb1=0.01 * jax.random.normal(k[5], (1, H), jnp.float32),
            w2=s_h * jax.random.normal(k[6], (H, E), jnp.float32),
            fb2=0.01 * jax.random.normal(k[7], (1, E), jnp.float32),
            g2=jnp.ones((1, E), jnp.float32), be2=jnp.zeros((1, E), jnp.float32),
        ))
    wc1 = s_e * jax.random.normal(keys[1], (E, H), jnp.float32)
    bc1 = jnp.zeros((1, H), jnp.float32)
    wc2 = s_h * jax.random.normal(keys[2], (1, H), jnp.float32)  # Linear(H,1,no bias), row form
    return dict(emb=emb, pe=pe, layers=layers, wc1=wc1, bc1=bc1, wc2=wc2)


# ----------------------------- main --------------------------------------------

if __name__ == "__main__":
    vocab, E, Hdim = 50, 32, 64
    num_heads, num_layers = 4, 2
    max_seq, S, window_size, B = 16, 8, 4, 2

    key = jax.random.PRNGKey(0)
    pkey, skey = jax.random.split(key)
    params = init_params(pkey, vocab, E, Hdim, num_layers, max_seq)

    sentence = jax.random.randint(skey, (B, S), 1, vocab)
    padding_mask = jnp.array([[1] * S, [1] * (S - 3) + [0] * 3], dtype=jnp.int32)
    sentence = sentence * padding_mask               # padded positions -> token 0

    prepped = prepare_params(params, num_heads)      # one-time weight prep (load time)

    out = encoder_forward_pallas(prepped, sentence, padding_mask,
                                 num_heads=num_heads, window_size=window_size)
    out = jax.block_until_ready(out)

    ref = encoder_forward_ref(params, sentence, padding_mask, num_heads, window_size)
    err = float(jnp.max(jnp.abs(out - ref)))

    assert out.shape == (B, 1), out.shape
    assert err < 5e-2, f"max abs diff vs reference: {err}"
    print("KERNEL_OK")
</pallas_src>

<mosaic_0001>
module attributes {stable_mosaic.version = 11 : i64} {
  func.func @encoder_kernel(%arg0: i32, %arg1: i32, %arg2: memref<1x8x32xf32, #tpu.memory_space<vmem>>, %arg3: memref<1x8x8xf32, #tpu.memory_space<vmem>>, %arg4: memref<1x32x96xbf16, #tpu.memory_space<vmem>>, %arg5: memref<1x1x96xf32, #tpu.memory_space<vmem>>, %arg6: memref<1x32x32xbf16, #tpu.memory_space<vmem>>, %arg7: memref<1x1x32xf32, #tpu.memory_space<vmem>>, %arg8: memref<1x1x32xf32, #tpu.memory_space<vmem>>, %arg9: memref<1x1x32xf32, #tpu.memory_space<vmem>>, %arg10: memref<1x32x64xbf16, #tpu.memory_space<vmem>>, %arg11: memref<1x1x64xf32, #tpu.memory_space<vmem>>, %arg12: memref<1x64x32xbf16, #tpu.memory_space<vmem>>, %arg13: memref<1x1x32xf32, #tpu.memory_space<vmem>>, %arg14: memref<1x1x32xf32, #tpu.memory_space<vmem>>, %arg15: memref<1x1x32xf32, #tpu.memory_space<vmem>>, %arg16: memref<32x64xbf16, #tpu.memory_space<vmem>>, %arg17: memref<1x64xf32, #tpu.memory_space<vmem>>, %arg18: memref<1x64xf32, #tpu.memory_space<vmem>>, %arg19: memref<1x1x1xf32, #tpu.memory_space<vmem>>, %arg20: memref<8x32xf32, #tpu.memory_space<vmem>>) attributes {dimension_semantics = [#tpu.dimension_semantics<parallel>, #tpu.dimension_semantics<arbitrary>], iteration_bounds = array<i64: 2, 2>, scalar_prefetch = 0 : i64, scratch_operands = 1 : i64, tpu.core_type = #tpu.core_type<tc>, window_params = [{transform_indices = @transform_0, window_bounds = array<i64: 1, 8, 32>}, {transform_indices = @transform_1, window_bounds = array<i64: 1, 8, 8>}, {transform_indices = @transform_2, window_bounds = array<i64: 1, 32, 96>}, {transform_indices = @transform_3, window_bounds = array<i64: 1, 1, 96>}, {transform_indices = @transform_4, window_bounds = array<i64: 1, 32, 32>}, {transform_indices = @transform_5, window_bounds = array<i64: 1, 1, 32>}, {transform_indices = @transform_6, window_bounds = array<i64: 1, 1, 32>}, {transform_indices = @transform_7, window_bounds = array<i64: 1, 1, 32>}, {transform_indices = @transform_8, window_bounds = array<i64: 1, 32, 64>}, {transform_indices = @transform_9, window_bounds = array<i64: 1, 1, 64>}, {transform_indices = @transform_10, window_bounds = array<i64: 1, 64, 32>}, {transform_indices = @transform_11, window_bounds = array<i64: 1, 1, 32>}, {transform_indices = @transform_12, window_bounds = array<i64: 1, 1, 32>}, {transform_indices = @transform_13, window_bounds = array<i64: 1, 1, 32>}, {pipeline_mode = #tpu.pipeline_mode<synchronous>, transform_indices = @transform_14, window_bounds = array<i64: 32, 64>}, {pipeline_mode = #tpu.pipeline_mode<synchronous>, transform_indices = @transform_15, window_bounds = array<i64: 1, 64>}, {pipeline_mode = #tpu.pipeline_mode<synchronous>, transform_indices = @transform_16, window_bounds = array<i64: 1, 64>}, {transform_indices = @transform_17, window_bounds = array<i64: 1, 1, 1>}]} {
    %c0_i32 = arith.constant 0 : i32
    %0 = arith.cmpi eq, %arg1, %c0_i32 : i32
    %1 = arith.extui %0 : i1 to i32
    %c0_i32_0 = arith.constant 0 : i32
    %2 = arith.cmpi ne, %1, %c0_i32_0 : i32
    scf.if %2 {
      %c0_70 = arith.constant 0 : index
      %c0_71 = arith.constant 0 : index
      %c0_72 = arith.constant 0 : index
      %177 = vector.load %arg2[%c0_70, %c0_71, %c0_72] : memref<1x8x32xf32, #tpu.memory_space<vmem>>, vector<1x8x32xf32>
      %178 = vector.shape_cast %177 : vector<1x8x32xf32> to vector<8x32xf32>
      %c0_73 = arith.constant 0 : index
      %c0_74 = arith.constant 0 : index
      %179 = vector.load %arg20[%c0_73, %c0_74] : memref<8x32xf32, #tpu.memory_space<vmem>>, vector<8x32xf32>
      tpu.vector_store %arg20[%c0_73, %c0_74], %178 {strides = array<i32>} : memref<8x32xf32, #tpu.memory_space<vmem>>, vector<8x32xf32>,
    } else {
    }
    %c0 = arith.constant 0 : index
    %c0_1 = arith.constant 0 : index
    %3 = vector.load %arg20[%c0, %c0_1] : memref<8x32xf32, #tpu.memory_space<vmem>>, vector<8x32xf32>
    %c0_2 = arith.constant 0 : index
    %c0_3 = arith.constant 0 : index
    %c0_4 = arith.constant 0 : index
    %4 = vector.load %arg3[%c0_2, %c0_3, %c0_4] : memref<1x8x8xf32, #tpu.memory_space<vmem>>, vector<1x8x8xf32>
    %5 = vector.shape_cast %4 : vector<1x8x8xf32> to vector<8x8xf32>
    %cst = arith.constant 5.000000e-01 : f32
    %6 = vector.broadcast %cst : f32 to vector<8x8xf32>
    %7 = arith.cmpf ogt, %5, %6 : vector<8x8xf32>
    %8 = arith.truncf %3 : vector<8x32xf32> to vector<8x32xbf16>
    %c0_5 = arith.constant 0 : index
    %c0_6 = arith.constant 0 : index
    %c0_7 = arith.constant 0 : index
    %9 = vector.load %arg4[%c0_5, %c0_6, %c0_7] : memref<1x32x96xbf16, #tpu.memory_space<vmem>>, vector<1x32x96xbf16>
    %10 = vector.shape_cast %9 : vector<1x32x96xbf16> to vector<32x96xbf16>
    %cst_8 = arith.constant dense<0.000000e+00> : vector<8x96xf32>
    %11 = tpu.matmul %8, %10, %cst_8 {dimension_numbers = #tpu.dot_dimension_numbers<[1], [0], [0], [1], [0, 0, 1, 1], [], []>} : vector<8x32xbf16>, vector<32x96xbf16>, vector<8x96xf32> -> vector<8x96xf32>
    %c0_9 = arith.constant 0 : index
    %c0_10 = arith.constant 0 : index
    %c0_11 = arith.constant 0 : index
    %12 = vector.load %arg5[%c0_9, %c0_10, %c0_11] : memref<1x1x96xf32, #tpu.memory_space<vmem>>, vector<1x1x96xf32>
    %13 = vector.shape_cast %12 : vector<1x1x96xf32> to vector<1x96xf32>
    %14 = vector.broadcast %13 : vector<1x96xf32> to vector<8x96xf32>
    %15 = arith.addf %11, %14 : vector<8x96xf32>
    %16 = vector.extract_strided_slice %15 {offsets = [0, 0], sizes = [8, 8], strides = [1, 1]} : vector<8x96xf32> to vector<8x8xf32>
    %17 = vector.extract_strided_slice %15 {offsets = [0, 8], sizes = [8, 8], strides = [1, 1]} : vector<8x96xf32> to vector<8x8xf32>
    %18 = vector.extract_strided_slice %15 {offsets = [0, 16], sizes = [8, 8], strides = [1, 1]} : vector<8x96xf32> to vector<8x8xf32>
    %19 = vector.extract_strided_slice %15 {offsets = [0, 24], sizes = [8, 8], strides = [1, 1]} : vector<8x96xf32> to vector<8x8xf32>
    %20 = vector.shape_cast %16 : vector<8x8xf32> to vector<1x8x8xf32>
    %21 = vector.shape_cast %17 : vector<8x8xf32> to vector<1x8x8xf32>
    %22 = vector.shape_cast %18 : vector<8x8xf32> to vector<1x8x8xf32>
    %23 = vector.shape_cast %19 : vector<8x8xf32> to vector<1x8x8xf32>
    %24 = tpu.concatenate %20, %21, %22, %23 in 0 : vector<1x8x8xf32>, vector<1x8x8xf32>, vector<1x8x8xf32>, vector<1x8x8xf32> -> vector<4x8x8xf32>
    %25 = vector.extract_strided_slice %15 {offsets = [0, 32], sizes = [8, 8], strides = [1, 1]} : vector<8x96xf32> to vector<8x8xf32>
    %26 = vector.extract_strided_slice %15 {offsets = [0, 40], sizes = [8, 8], strides = [1, 1]} : vector<8x96xf32> to vector<8x8xf32>
    %27 = vector.extract_strided_slice %15 {offsets = [0, 48], sizes = [8, 8], strides = [1, 1]} : vector<8x96xf32> to vector<8x8xf32>
    %28 = vector.extract_strided_slice %15 {offsets = [0, 56], sizes = [8, 8], strides = [1, 1]} : vector<8x96xf32> to vector<8x8xf32>
    %29 = vector.shape_cast %25 : vector<8x8xf32> to vector<1x8x8xf32>
    %30 = vector.shape_cast %26 : vector<8x8xf32> to vector<1x8x8xf32>
    %31 = vector.shape_cast %27 : vector<8x8xf32> to vector<1x8x8xf32>
    %32 = vector.shape_cast %28 : vector<8x8xf32> to vector<1x8x8xf32>
    %33 = tpu.concatenate %29, %30, %31, %32 in 0 : vector<1x8x8xf32>, vector<1x8x8xf32>, vector<1x8x8xf32>, vector<1x8x8xf32> -> vector<4x8x8xf32>
    %34 = vector.extract_strided_slice %15 {offsets = [0, 64], sizes = [8, 8], strides = [1, 1]} : vector<8x96xf32> to vector<8x8xf32>
    %35 = vector.extract_strided_slice %15 {offsets = [0, 72], sizes = [8, 8], strides = [1, 1]} : vector<8x96xf32> to vector<8x8xf32>
    %36 = vector.extract_strided_slice %15 {offsets = [0, 80], sizes = [8, 8], strides = [1, 1]} : vector<8x96xf32> to vector<8x8xf32>
    %37 = vector.extract_strided_slice %15 {offsets = [0, 88], sizes = [8, 8], strides = [1, 1]} : vector<8x96xf32> to vector<8x8xf32>
    %38 = vector.shape_cast %34 : vector<8x8xf32> to vector<1x8x8xf32>
    %39 = vector.shape_cast %35 : vector<8x8xf32> to vector<1x8x8xf32>
    %40 = vector.shape_cast %36 : vector<8x8xf32> to vector<1x8x8xf32>
    %41 = vector.shape_cast %37 : vector<8x8xf32> to vector<1x8x8xf32>
    %42 = tpu.concatenate %38, %39, %40, %41 in 0 : vector<1x8x8xf32>, vector<1x8x8xf32>, vector<1x8x8xf32>, vector<1x8x8xf32> -> vector<4x8x8xf32>
    %43 = arith.truncf %24 : vector<4x8x8xf32> to vector<4x8x8xbf16>
    %44 = arith.truncf %33 : vector<4x8x8xf32> to vector<4x8x8xbf16>
    %cst_12 = arith.constant dense<0.000000e+00> : vector<4x8x8xf32>
    %45 = tpu.matmul %43, %44, %cst_12 {dimension_numbers = #tpu.dot_dimension_numbers<[2], [2], [1], [1], [0, 0, 0, 1, 1, 1], [0], [0]>} : vector<4x8x8xbf16>, vector<4x8x8xbf16>, vector<4x8x8xf32> -> vector<4x8x8xf32>
    %46 = vector.shape_cast %7 : vector<8x8xi1> to vector<1x8x8xi1>
    %cst_13 = arith.constant -1.000000e+30 : f32
    %47 = vector.shape_cast %46 : vector<1x8x8xi1> to vector<1x8x8xi1>
    %48 = vector.broadcast %47 : vector<1x8x8xi1> to vector<4x8x8xi1>
    %49 = vector.broadcast %cst_13 : f32 to vector<4x8x8xf32>
    %50 = arith.select %48, %45, %49 : vector<4x8x8xi1>, vector<4x8x8xf32>
    %cst_14 = arith.constant dense<0xFF800000> : vector<4x8xf32>
    %51 = vector.multi_reduction <maximumf>, %50, %cst_14 [2] : vector<4x8x8xf32> to vector<4x8xf32>
    %52 = vector.shape_cast %51 : vector<4x8xf32> to vector<4x8x1xf32>
    %53 = vector.shape_cast %7 : vector<8x8xi1> to vector<1x8x8xi1>
    %54 = vector.broadcast %52 : vector<4x8x1xf32> to vector<4x8x8xf32>
    %55 = arith.subf %50, %54 : vector<4x8x8xf32>
    %56 = math.exp %55 : vector<4x8x8xf32>
    %cst_15 = arith.constant 0.000000e+00 : f32
    %57 = vector.shape_cast %53 : vector<1x8x8xi1> to vector<1x8x8xi1>
    %58 = vector.broadcast %57 : vector<1x8x8xi1> to vector<4x8x8xi1>
    %59 = vector.broadcast %cst_15 : f32 to vector<4x8x8xf32>
    %60 = arith.select %58, %56, %59 : vector<4x8x8xi1>, vector<4x8x8xf32>
    %cst_16 = arith.constant dense<0.000000e+00> : vector<4x8xf32>
    %61 = vector.multi_reduction <add>, %60, %cst_16 [2] : vector<4x8x8xf32> to vector<4x8xf32>
    %62 = vector.shape_cast %61 : vector<4x8xf32> to vector<4x8x1xf32>
    %cst_17 = arith.constant 0.000000e+00 : f32
    %63 = vector.broadcast %cst_17 : f32 to vector<4x8x1xf32>
    %64 = arith.cmpf oeq, %62, %63 : vector<4x8x1xf32>
    %cst_18 = arith.constant 1.000000e+00 : f32
    %65 = vector.broadcast %cst_18 : f32 to vector<4x8x1xf32>
    %66 = arith.select %64, %65, %62 : vector<4x8x1xi1>, vector<4x8x1xf32>
    %67 = tpu.reciprocal %66 {approx = true} : vector<4x8x1xf32> -> vector<4x8x1xf32>
    %68 = vector.broadcast %67 : vector<4x8x1xf32> to vector<4x8x8xf32>
    %69 = arith.mulf %60, %68 : vector<4x8x8xf32>
    %70 = arith.truncf %69 : vector<4x8x8xf32> to vector<4x8x8xbf16>
    %71 = arith.truncf %42 : vector<4x8x8xf32> to vector<4x8x8xbf16>
    %cst_19 = arith.constant dense<0.000000e+00> : vector<4x8x8xf32>
    %72 = tpu.matmul %70, %71, %cst_19 {dimension_numbers = #tpu.dot_dimension_numbers<[2], [1], [1], [2], [0, 0, 0, 1, 1, 2], [0], [0]>} : vector<4x8x8xbf16>, vector<4x8x8xbf16>, vector<4x8x8xf32> -> vector<4x8x8xf32>
    %73 = vector.extract_strided_slice %72 {offsets = [0, 0, 0], sizes = [1, 8, 8], strides = [1, 1, 1]} : vector<4x8x8xf32> to vector<1x8x8xf32>
    %74 = vector.shape_cast %73 : vector<1x8x8xf32> to vector<8x8xf32>
    %75 = vector.extract_strided_slice %72 {offsets = [1, 0, 0], sizes = [1, 8, 8], strides = [1, 1, 1]} : vector<4x8x8xf32> to vector<1x8x8xf32>
    %76 = vector.shape_cast %75 : vector<1x8x8xf32> to vector<8x8xf32>
    %77 = vector.extract_strided_slice %72 {offsets = [2, 0, 0], sizes = [1, 8, 8], strides = [1, 1, 1]} : vector<4x8x8xf32> to vector<1x8x8xf32>
    %78 = vector.shape_cast %77 : vector<1x8x8xf32> to vector<8x8xf32>
    %79 = vector.extract_strided_slice %72 {offsets = [3, 0, 0], sizes = [1, 8, 8], strides = [1, 1, 1]} : vector<4x8x8xf32> to vector<1x8x8xf32>
    %80 = vector.shape_cast %79 : vector<1x8x8xf32> to vector<8x8xf32>
    %81 = tpu.concatenate %74, %76, %78, %80 in 1 : vector<8x8xf32>, vector<8x8xf32>, vector<8x8xf32>, vector<8x8xf32> -> vector<8x32xf32>
    %82 = arith.truncf %81 : vector<8x32xf32> to vector<8x32xbf16>
    %c0_20 = arith.constant 0 : index
    %c0_21 = arith.constant 0 : index
    %c0_22 = arith.constant 0 : index
    %83 = vector.load %arg6[%c0_20, %c0_21, %c0_22] : memref<1x32x32xbf16, #tpu.memory_space<vmem>>, vector<1x32x32xbf16>
    %84 = vector.shape_cast %83 : vector<1x32x32xbf16> to vector<32x32xbf16>
    %cst_23 = arith.constant dense<0.000000e+00> : vector<8x32xf32>
    %85 = tpu.matmul %82, %84, %cst_23 {dimension_numbers = #tpu.dot_dimension_numbers<[1], [0], [0], [1], [0, 0, 1, 1], [], []>} : vector<8x32xbf16>, vector<32x32xbf16>, vector<8x32xf32> -> vector<8x32xf32>
    %c0_24 = arith.constant 0 : index
    %c0_25 = arith.constant 0 : index
    %c0_26 = arith.constant 0 : index
    %86 = vector.load %arg7[%c0_24, %c0_25, %c0_26] : memref<1x1x32xf32, #tpu.memory_space<vmem>>, vector<1x1x32xf32>
    %87 = vector.shape_cast %86 : vector<1x1x32xf32> to vector<1x32xf32>
    %88 = vector.broadcast %87 : vector<1x32xf32> to vector<8x32xf32>
    %89 = arith.addf %85, %88 : vector<8x32xf32>
    %90 = arith.addf %3, %89 : vector<8x32xf32>
    %c0_27 = arith.constant 0 : index
    %c0_28 = arith.constant 0 : index
    %c0_29 = arith.constant 0 : index
    %91 = vector.load %arg8[%c0_27, %c0_28, %c0_29] : memref<1x1x32xf32, #tpu.memory_space<vmem>>, vector<1x1x32xf32>
    %92 = vector.shape_cast %91 : vector<1x1x32xf32> to vector<1x32xf32>
    %c0_30 = arith.constant 0 : index
    %c0_31 = arith.constant 0 : index
    %c0_32 = arith.constant 0 : index
    %93 = vector.load %arg9[%c0_30, %c0_31, %c0_32] : memref<1x1x32xf32, #tpu.memory_space<vmem>>, vector<1x1x32xf32>
    %94 = vector.shape_cast %93 : vector<1x1x32xf32> to vector<1x32xf32>
    %cst_33 = arith.constant dense<0.000000e+00> : vector<8xf32>
    %95 = vector.multi_reduction <add>, %90, %cst_33 [1] : vector<8x32xf32> to vector<8xf32>
    %96 = vector.shape_cast %95 : vector<8xf32> to vector<8x1xf32>
    %cst_34 = arith.constant 3.200000e+01 : f32
    %97 = vector.broadcast %cst_34 : f32 to vector<8x1xf32>
    %98 = arith.divf %96, %97 : vector<8x1xf32>
    %99 = vector.broadcast %98 : vector<8x1xf32> to vector<8x32xf32>
    %100 = arith.subf %90, %99 : vector<8x32xf32>
    %101 = arith.mulf %100, %100 : vector<8x32xf32>
    %cst_35 = arith.constant dense<0.000000e+00> : vector<8xf32>
    %102 = vector.multi_reduction <add>, %101, %cst_35 [1] : vector<8x32xf32> to vector<8xf32>
    %103 = vector.shape_cast %102 : vector<8xf32> to vector<8x1xf32>
    %cst_36 = arith.constant 3.200000e+01 : f32
    %104 = vector.broadcast %cst_36 : f32 to vector<8x1xf32>
    %105 = arith.divf %103, %104 : vector<8x1xf32>
    %106 = vector.broadcast %98 : vector<8x1xf32> to vector<8x32xf32>
    %107 = arith.subf %90, %106 : vector<8x32xf32>
    %cst_37 = arith.constant 9.99999974E-6 : f32
    %108 = vector.broadcast %cst_37 : f32 to vector<8x1xf32>
    %109 = arith.addf %105, %108 : vector<8x1xf32>
    %110 = math.rsqrt %109 : vector<8x1xf32>
    %111 = vector.broadcast %110 : vector<8x1xf32> to vector<8x32xf32>
    %112 = arith.mulf %107, %111 : vector<8x32xf32>
    %113 = vector.broadcast %92 : vector<1x32xf32> to vector<8x32xf32>
    %114 = arith.mulf %112, %113 : vector<8x32xf32>
    %115 = vector.broadcast %94 : vector<1x32xf32> to vector<8x32xf32>
    %116 = arith.addf %114, %115 : vector<8x32xf32>
    %117 = arith.truncf %116 : vector<8x32xf32> to vector<8x32xbf16>
    %c0_38 = arith.constant 0 : index
    %c0_39 = arith.constant 0 : index
    %c0_40 = arith.constant 0 : index
    %118 = vector.load %arg10[%c0_38, %c0_39, %c0_40] : memref<1x32x64xbf16, #tpu.memory_space<vmem>>, vector<1x32x64xbf16>
    %119 = vector.shape_cast %118 : vector<1x32x64xbf16> to vector<32x64xbf16>
    %cst_41 = arith.constant dense<0.000000e+00> : vector<8x64xf32>
    %120 = tpu.matmul %117, %119, %cst_41 {dimension_numbers = #tpu.dot_dimension_numbers<[1], [0], [0], [1], [0, 0, 1, 1], [], []>} : vector<8x32xbf16>, vector<32x64xbf16>, vector<8x64xf32> -> vector<8x64xf32>
    %c0_42 = arith.constant 0 : index
    %c0_43 = arith.constant 0 : index
    %c0_44 = arith.constant 0 : index
    %121 = vector.load %arg11[%c0_42, %c0_43, %c0_44] : memref<1x1x64xf32, #tpu.memory_space<vmem>>, vector<1x1x64xf32>
    %122 = vector.shape_cast %121 : vector<1x1x64xf32> to vector<1x64xf32>
    %123 = vector.broadcast %122 : vector<1x64xf32> to vector<8x64xf32>
    %124 = arith.addf %120, %123 : vector<8x64xf32>
    %cst_45 = arith.constant 5.000000e-01 : f32
    %125 = vector.broadcast %cst_45 : f32 to vector<8x64xf32>
    %126 = arith.mulf %125, %124 : vector<8x64xf32>
    %cst_46 = arith.constant 4.471500e-02 : f32
    %127 = vector.broadcast %cst_46 : f32 to vector<8x64xf32>
    %128 = arith.mulf %127, %124 : vector<8x64xf32>
    %129 = arith.mulf %128, %124 : vector<8x64xf32>
    %130 = arith.mulf %129, %124 : vector<8x64xf32>
    %131 = arith.addf %124, %130 : vector<8x64xf32>
    %cst_47 = arith.constant 0.797884583 : f32
    %132 = vector.broadcast %cst_47 : f32 to vector<8x64xf32>
    %133 = arith.mulf %132, %131 : vector<8x64xf32>
    %134 = math.tanh %133 : vector<8x64xf32>
    %cst_48 = arith.constant 1.000000e+00 : f32
    %135 = vector.broadcast %cst_48 : f32 to vector<8x64xf32>
    %136 = arith.addf %135, %134 : vector<8x64xf32>
    %137 = arith.mulf %126, %136 : vector<8x64xf32>
    %138 = arith.truncf %137 : vector<8x64xf32> to vector<8x64xbf16>
    %c0_49 = arith.constant 0 : index
    %c0_50 = arith.constant 0 : index
    %c0_51 = arith.constant 0 : index
    %139 = vector.load %arg12[%c0_49, %c0_50, %c0_51] : memref<1x64x32xbf16, #tpu.memory_space<vmem>>, vector<1x64x32xbf16>
    %140 = vector.shape_cast %139 : vector<1x64x32xbf16> to vector<64x32xbf16>
    %cst_52 = arith.constant dense<0.000000e+00> : vector<8x32xf32>
    %141 = tpu.matmul %138, %140, %cst_52 {dimension_numbers = #tpu.dot_dimension_numbers<[1], [0], [0], [1], [0, 0, 1, 1], [], []>} : vector<8x64xbf16>, vector<64x32xbf16>, vector<8x32xf32> -> vector<8x32xf32>
    %c0_53 = arith.constant 0 : index
    %c0_54 = arith.constant 0 : index
    %c0_55 = arith.constant 0 : index
    %142 = vector.load %arg13[%c0_53, %c0_54, %c0_55] : memref<1x1x32xf32, #tpu.memory_space<vmem>>, vector<1x1x32xf32>
    %143 = vector.shape_cast %142 : vector<1x1x32xf32> to vector<1x32xf32>
    %144 = vector.broadcast %143 : vector<1x32xf32> to vector<8x32xf32>
    %145 = arith.addf %141, %144 : vector<8x32xf32>
    %146 = arith.addf %116, %145 : vector<8x32xf32>
    %c0_56 = arith.constant 0 : index
    %c0_57 = arith.constant 0 : index
    %c0_58 = arith.constant 0 : index
    %147 = vector.load %arg14[%c0_56, %c0_57, %c0_58] : memref<1x1x32xf32, #tpu.memory_space<vmem>>, vector<1x1x32xf32>
    %148 = vector.shape_cast %147 : vector<1x1x32xf32> to vector<1x32xf32>
    %c0_59 = arith.constant 0 : index
    %c0_60 = arith.constant 0 : index
    %c0_61 = arith.constant 0 : index
    %149 = vector.load %arg15[%c0_59, %c0_60, %c0_61] : memref<1x1x32xf32, #tpu.memory_space<vmem>>, vector<1x1x32xf32>
    %150 = vector.shape_cast %149 : vector<1x1x32xf32> to vector<1x32xf32>
    %cst_62 = arith.constant dense<0.000000e+00> : vector<8xf32>
    %151 = vector.multi_reduction <add>, %146, %cst_62 [1] : vector<8x32xf32> to vector<8xf32>
    %152 = vector.shape_cast %151 : vector<8xf32> to vector<8x1xf32>
    %cst_63 = arith.constant 3.200000e+01 : f32
    %153 = vector.broadcast %cst_63 : f32 to vector<8x1xf32>
    %154 = arith.divf %152, %153 : vector<8x1xf32>
    %155 = vector.broadcast %154 : vector<8x1xf32> to vector<8x32xf32>
    %156 = arith.subf %146, %155 : vector<8x32xf32>
    %157 = arith.mulf %156, %156 : vector<8x32xf32>
    %cst_64 = arith.constant dense<0.000000e+00> : vector<8xf32>
    %158 = vector.multi_reduction <add>, %157, %cst_64 [1] : vector<8x32xf32> to vector<8xf32>
    %159 = vector.shape_cast %158 : vector<8xf32> to vector<8x1xf32>
    %cst_65 = arith.constant 3.200000e+01 : f32
    %160 = vector.broadcast %cst_65 : f32 to vector<8x1xf32>
    %161 = arith.divf %159, %160 : vector<8x1xf32>
    %162 = vector.broadcast %154 : vector<8x1xf32> to vector<8x32xf32>
    %163 = arith.subf %146, %162 : vector<8x32xf32>
    %cst_66 = arith.constant 9.99999974E-6 : f32
    %164 = vector.broadcast %cst_66 : f32 to vector<8x1xf32>
    %165 = arith.addf %161, %164 : vector<8x1xf32>
    %166 = math.rsqrt %165 : vector<8x1xf32>
    %167 = vector.broadcast %166 : vector<8x1xf32> to vector<8x32xf32>
    %168 = arith.mulf %163, %167 : vector<8x32xf32>
    %169 = vector.broadcast %148 : vector<1x32xf32> to vector<8x32xf32>
    %170 = arith.mulf %168, %169 : vector<8x32xf32>
    %171 = vector.broadcast %150 : vector<1x32xf32> to vector<8x32xf32>
    %172 = arith.addf %170, %171 : vector<8x32xf32>
    %c0_67 = arith.constant 0 : index
    %c0_68 = arith.constant 0 : index
    %173 = vector.load %arg20[%c0_67, %c0_68] : memref<8x32xf32, #tpu.memory_space<vmem>>, vector<8x32xf32>
    tpu.vector_store %arg20[%c0_67, %c0_68], %172 {strides = array<i32>} : memref<8x32xf32, #tpu.memory_space<vmem>>, vector<8x32xf32>,
    %c1_i32 = arith.constant 1 : i32
    %174 = arith.cmpi eq, %arg1, %c1_i32 : i32
    %175 = arith.extui %174 : i1 to i32
    %c0_i32_69 = arith.constant 0 : i32
    %176 = arith.cmpi ne, %175, %c0_i32_69 : i32
    scf.if %176 {
      %177 = vector.extract_strided_slice %172 {offsets = [0, 0], sizes = [1, 32], strides = [1, 1]} : vector<8x32xf32> to vector<1x32xf32>
      %178 = arith.truncf %177 : vector<1x32xf32> to vector<1x32xbf16>
      %c0_70 = arith.constant 0 : index
      %c0_71 = arith.constant 0 : index
      %179 = vector.load %arg16[%c0_70, %c0_71] : memref<32x64xbf16, #tpu.memory_space<vmem>>, vector<32x64xbf16>
      %cst_72 = arith.constant dense<0.000000e+00> : vector<1x64xf32>
      %180 = tpu.matmul %178, %179, %cst_72 {dimension_numbers = #tpu.dot_dimension_numbers<[1], [0], [0], [1], [0, 0, 1, 1], [], []>} : vector<1x32xbf16>, vector<32x64xbf16>, vector<1x64xf32> -> vector<1x64xf32>
      %c0_73 = arith.constant 0 : index
      %c0_74 = arith.constant 0 : index
      %181 = vector.load %arg17[%c0_73, %c0_74] : memref<1x64xf32, #tpu.memory_space<vmem>>, vector<1x64xf32>
      %182 = arith.addf %180, %181 : vector<1x64xf32>
      %183 = math.tanh %182 : vector<1x64xf32>
      %c0_75 = arith.constant 0 : index
      %c0_76 = arith.constant 0 : index
      %184 = vector.load %arg18[%c0_75, %c0_76] : memref<1x64xf32, #tpu.memory_space<vmem>>, vector<1x64xf32>
      %185 = arith.mulf %183, %184 : vector<1x64xf32>
      %cst_77 = arith.constant dense<0.000000e+00> : vector<1xf32>
      %186 = vector.multi_reduction <add>, %185, %cst_77 [1] : vector<1x64xf32> to vector<1xf32>
      %187 = vector.shape_cast %186 : vector<1xf32> to vector<1x1xf32>
      %188 = vector.shape_cast %187 : vector<1x1xf32> to vector<1x1x1xf32>
      %c0_78 = arith.constant 0 : index
      %c0_79 = arith.constant 0 : index
      %c0_80 = arith.constant 0 : index
      %189 = vector.load %arg19[%c0_78, %c0_79, %c0_80] : memref<1x1x1xf32, #tpu.memory_space<vmem>>, vector<1x1x1xf32>
      tpu.vector_store %arg19[%c0_78, %c0_79, %c0_80], %188 {strides = array<i32>} : memref<1x1x1xf32, #tpu.memory_space<vmem>>, vector<1x1x1xf32>,
    } else {
    }
    return
  }
  func.func @transform_0(%arg0: i32, %arg1: i32) -> (i32, i32, i32) {
    %c0_i32 = arith.constant 0 : i32
    %c0_i32_0 = arith.constant 0 : i32
    %c0_i32_1 = arith.constant 0 : i32
    return %arg0, %c0_i32, %c0_i32_0 : i32, i32, i32
  }
  func.func @transform_1(%arg0: i32, %arg1: i32) -> (i32, i32, i32) {
    %c0_i32 = arith.constant 0 : i32
    %c0_i32_0 = arith.constant 0 : i32
    %c0_i32_1 = arith.constant 0 : i32
    return %arg0, %c0_i32, %c0_i32_0 : i32, i32, i32
  }
  func.func @transform_2(%arg0: i32, %arg1: i32) -> (i32, i32, i32) {
    %c0_i32 = arith.constant 0 : i32
    %c0_i32_0 = arith.constant 0 : i32
    %c0_i32_1 = arith.constant 0 : i32
    return %arg1, %c0_i32, %c0_i32_0 : i32, i32, i32
  }
  func.func @transform_3(%arg0: i32, %arg1: i32) -> (i32, i32, i32) {
    %c0_i32 = arith.constant 0 : i32
    %c0_i32_0 = arith.constant 0 : i32
    %c0_i32_1 = arith.constant 0 : i32
    return %arg1, %c0_i32, %c0_i32_0 : i32, i32, i32
  }
  func.func @transform_4(%arg0: i32, %arg1: i32) -> (i32, i32, i32) {
    %c0_i32 = arith.constant 0 : i32
    %c0_i32_0 = arith.constant 0 : i32
    %c0_i32_1 = arith.constant 0 : i32
    return %arg1, %c0_i32, %c0_i32_0 : i32, i32, i32
  }
  func.func @transform_5(%arg0: i32, %arg1: i32) -> (i32, i32, i32) {
    %c0_i32 = arith.constant 0 : i32
    %c0_i32_0 = arith.constant 0 : i32
    %c0_i32_1 = arith.constant 0 : i32
    return %arg1, %c0_i32, %c0_i32_0 : i32, i32, i32
  }
  func.func @transform_6(%arg0: i32, %arg1: i32) -> (i32, i32, i32) {
    %c0_i32 = arith.constant 0 : i32
    %c0_i32_0 = arith.constant 0 : i32
    %c0_i32_1 = arith.constant 0 : i32
    return %arg1, %c0_i32, %c0_i32_0 : i32, i32, i32
  }
  func.func @transform_7(%arg0: i32, %arg1: i32) -> (i32, i32, i32) {
    %c0_i32 = arith.constant 0 : i32
    %c0_i32_0 = arith.constant 0 : i32
    %c0_i32_1 = arith.constant 0 : i32
    return %arg1, %c0_i32, %c0_i32_0 : i32, i32, i32
  }
  func.func @transform_8(%arg0: i32, %arg1: i32) -> (i32, i32, i32) {
    %c0_i32 = arith.constant 0 : i32
    %c0_i32_0 = arith.constant 0 : i32
    %c0_i32_1 = arith.constant 0 : i32
    return %arg1, %c0_i32, %c0_i32_0 : i32, i32, i32
  }
  func.func @transform_9(%arg0: i32, %arg1: i32) -> (i32, i32, i32) {
    %c0_i32 = arith.constant 0 : i32
    %c0_i32_0 = arith.constant 0 : i32
    %c0_i32_1 = arith.constant 0 : i32
    return %arg1, %c0_i32, %c0_i32_0 : i32, i32, i32
  }
  func.func @transform_10(%arg0: i32, %arg1: i32) -> (i32, i32, i32) {
    %c0_i32 = arith.constant 0 : i32
    %c0_i32_0 = arith.constant 0 : i32
    %c0_i32_1 = arith.constant 0 : i32
    return %arg1, %c0_i32, %c0_i32_0 : i32, i32, i32
  }
  func.func @transform_11(%arg0: i32, %arg1: i32) -> (i32, i32, i32) {
    %c0_i32 = arith.constant 0 : i32
    %c0_i32_0 = arith.constant 0 : i32
    %c0_i32_1 = arith.constant 0 : i32
    return %arg1, %c0_i32, %c0_i32_0 : i32, i32, i32
  }
  func.func @transform_12(%arg0: i32, %arg1: i32) -> (i32, i32, i32) {
    %c0_i32 = arith.constant 0 : i32
    %c0_i32_0 = arith.constant 0 : i32
    %c0_i32_1 = arith.constant 0 : i32
    return %arg1, %c0_i32, %c0_i32_0 : i32, i32, i32
  }
  func.func @transform_13(%arg0: i32, %arg1: i32) -> (i32, i32, i32) {
    %c0_i32 = arith.constant 0 : i32
    %c0_i32_0 = arith.constant 0 : i32
    %c0_i32_1 = arith.constant 0 : i32
    return %arg1, %c0_i32, %c0_i32_0 : i32, i32, i32
  }
  func.func @transform_14(%arg0: i32, %arg1: i32) -> (i32, i32) {
    %c0_i32 = arith.constant 0 : i32
    %c0_i32_0 = arith.constant 0 : i32
    %c0_i32_1 = arith.constant 0 : i32
    return %c0_i32, %c0_i32_0 : i32, i32
  }
  func.func @transform_15(%arg0: i32, %arg1: i32) -> (i32, i32) {
    %c0_i32 = arith.constant 0 : i32
    %c0_i32_0 = arith.constant 0 : i32
    %c0_i32_1 = arith.constant 0 : i32
    return %c0_i32, %c0_i32_0 : i32, i32
  }
  func.func @transform_16(%arg0: i32, %arg1: i32) -> (i32, i32) {
    %c0_i32 = arith.constant 0 : i32
    %c0_i32_0 = arith.constant 0 : i32
    %c0_i32_1 = arith.constant 0 : i32
    return %c0_i32, %c0_i32_0 : i32, i32
  }
  func.func @transform_17(%arg0: i32, %arg1: i32) -> (i32, i32, i32) {
    %c0_i32 = arith.constant 0 : i32
    %c0_i32_0 = arith.constant 0 : i32
    %c0_i32_1 = arith.constant 0 : i32
    return %arg0, %c0_i32, %c0_i32_0 : i32, i32, i32
  }
}

</mosaic_0001>

<llo_original>
// kernel: encoder_forward_pallas.1
$region0: #{encoder_forward_pallas.1}
  #allocation0 [shape = 'u32[]', space=smem, size = 0x4, offset = 0x4, fixed_abs, tag = 'smem constant byte address 0x4 - core index']
  #allocation1 [shape = 'u32[144,128]{1,0:T(1,128)}', space=vmem, size = 0x12000, scoped, tag = 'internal scratch']
  #allocation2 [shape = 'f32[8,32]{1,0:T(8,128)}', space=vmem, size = 0x1000, scoped, tag = 'scratch operand']
  %s0 = inlined_call_operand.vmem [shape: f32[2,8,32], index: 0, kind: input, shape index: {}]
  %s1 = inlined_call_operand.vmem [shape: f32[2,8,8], index: 1, kind: input, shape index: {}]
  %s2 = inlined_call_operand.vmem [shape: bf16[2,32,96], index: 2, kind: input, shape index: {}]
  %s3 = inlined_call_operand.vmem [shape: f32[2,1,96], index: 3, kind: input, shape index: {}]
  %s4 = inlined_call_operand.vmem [shape: bf16[2,32,32], index: 4, kind: input, shape index: {}]
  %s5 = inlined_call_operand.vmem [shape: f32[2,1,32], index: 5, kind: input, shape index: {}]
  %s6 = inlined_call_operand.vmem [shape: f32[2,1,32], index: 6, kind: input, shape index: {}]
  %s7 = inlined_call_operand.vmem [shape: f32[2,1,32], index: 7, kind: input, shape index: {}]
  %s8 = inlined_call_operand.vmem [shape: bf16[2,32,64], index: 8, kind: input, shape index: {}]
  %s9 = inlined_call_operand.vmem [shape: f32[2,1,64], index: 9, kind: input, shape index: {}]
  %s10 = inlined_call_operand.vmem [shape: bf16[2,64,32], index: 10, kind: input, shape index: {}]
  %s11 = inlined_call_operand.vmem [shape: f32[2,1,32], index: 11, kind: input, shape index: {}]
  %s12 = inlined_call_operand.vmem [shape: f32[2,1,32], index: 12, kind: input, shape index: {}]
  %s13 = inlined_call_operand.vmem [shape: f32[2,1,32], index: 13, kind: input, shape index: {}]
  %s14 = inlined_call_operand.vmem [shape: bf16[32,64], index: 14, kind: input, shape index: {}]
  %s15 = inlined_call_operand.vmem [shape: f32[1,64], index: 15, kind: input, shape index: {}]
  %s16 = inlined_call_operand.vmem [shape: f32[1,64], index: 16, kind: input, shape index: {}]
  %s17 = inlined_call_operand.vmem [shape: f32[2,1,1], index: 17, kind: output, shape index: {}]
  %s18 = sld [smem:[#allocation0]]
  $region109: #{encoder_forward_pallas.1} parent=0
    _
  %s20 = ssub.s32 1, %s18
  %s21 = scalar_select 0, %s20, %s18
  loop: start=0, step=1, limit=6
  $region2: #{encoder_forward_pallas.1} parent=0 // loop_pre_header
    _
  $region3: #{encoder_forward_pallas.1} parent=0 // loop_header
    %s23 = sphi 0, %s27
    %p24 = scmp.ge.s32.totalorder %s23, 6
    %s30 = sphi 0, %s42
    %s31 = sphi 0, %s38
    %s32 = sphi 0, %s30
    %s33 = sphi 0, %s31
    %s34 = sphi 0, %s32
    %s35 = sphi 0, %s33
    %s45 = sphi 0, %s47
    %s48 = sphi 0, %s45
    %s49 = sphi 0, %s48
    %s65 = sphi 0, %s49
    %s71 = sphi 0, %s73
    %s74 = sphi 0, %s71
    %s75 = sphi 0, %s74
    %s91 = sphi 0, %s75
    %s97 = sphi 0, %s99
    %s100 = sphi 0, %s97
    %s101 = sphi 0, %s100
    %s117 = sphi 0, %s101
    %s123 = sphi 0, %s125
    %s126 = sphi 0, %s123
    %s127 = sphi 0, %s126
    %s143 = sphi 0, %s127
    %s149 = sphi 0, %s151
    %s152 = sphi 0, %s149
    %s153 = sphi 0, %s152
    %s169 = sphi 0, %s153
    %s175 = sphi 0, %s177
    %s178 = sphi 0, %s175
    %s179 = sphi 0, %s178
    %s195 = sphi 0, %s179
    %s201 = sphi 0, %s203
    %s204 = sphi 0, %s201
    %s205 = sphi 0, %s204
    %s221 = sphi 0, %s205
    %s227 = sphi 0, %s229
    %s230 = sphi 0, %s227
    %s231 = sphi 0, %s230
    %s247 = sphi 0, %s231
    %s253 = sphi 0, %s255
    %s256 = sphi 0, %s253
    %s257 = sphi 0, %s256
    %s273 = sphi 0, %s257
    %s279 = sphi 0, %s281
    %s282 = sphi 0, %s279
    %s283 = sphi 0, %s282
    %s299 = sphi 0, %s283
    %s305 = sphi 0, %s307
    %s308 = sphi 0, %s305
    %s309 = sphi 0, %s308
    %s325 = sphi 0, %s309
    %s331 = sphi 0, %s333
    %s334 = sphi 0, %s331
    %s335 = sphi 0, %s334
    %s351 = sphi 0, %s335
    %s357 = sphi 0, %s359
    %s360 = sphi 0, %s357
    %s361 = sphi 0, %s360
    %s377 = sphi 0, %s361
    %s383 = sphi 0, %s385
    %s386 = sphi 0, %s383
    %s387 = sphi 0, %s386
    %s403 = sphi 0, %s387
    %s407 = sphi 0, %s407
    %s409 = sphi 0, %s407
    %s410 = sphi 0, %s409
    %s424 = sphi 0, %s410
    %s428 = sphi 0, %s428
    %s430 = sphi 0, %s428
    %s431 = sphi 0, %s430
    %s445 = sphi 0, %s431
    %s449 = sphi 0, %s449
    %s451 = sphi 0, %s449
    %s452 = sphi 0, %s451
    %s466 = sphi 0, %s452
    %s472 = sphi 0, %s474
    %s475 = sphi 0, %s472
    %s476 = sphi 0, %s475
    %s492 = sphi 0, %s476
  $region4: #{encoder_forward_pallas.1} parent=0 // loop_header_branch
    %26 = sbr.rel (%p24) target = $region8
  $region5: #{encoder_forward_pallas.1} parent=0 // loop_body
    %s28 = ssub.s32 %s23, 1
    %s29 = ssub.s32 %s23, 2
    %s36 = sadd.s32 1, %s31
    %p37 = scmp.ge.s32.totalorder %s36, 2
    %s38 = scalar_select %p37, 0, %s36
    %s39 = sadd.s32 1, %s30
    %s40 = scalar_select %p37, %s39, %s30
    %p41 = scmp.ge.s32.totalorder %s40, 2
    %s42 = scalar_select %p41, 0, %s40
    %s43 = ssub.s32 %s30, %s42
    %p44 = scmp.eq.s32.totalorder %s43, 0
    %s46 = sadd.s32 %s45, 1
    %s47 = scalar_select %p44, %s45, %s46
    %p50 = pneg %p44
    %p51 = scmp.eq.s32.totalorder %s23, 3
    %p52 = por %p50, %p51
    %p53 = scmp.ne.s32.totalorder %s45, %s48
    %p54 = scmp.eq.s32.totalorder %s23, 0
    %p55 = por %p53, %p54
    %p56 = scmp.ne.s32.totalorder %s45, %s48
    %p57 = scmp.eq.s32.totalorder %s28, 3
    %p58 = por %p56, %p57
    %p59 = scmp.ne.s32.totalorder %s48, %s49
    %p60 = scmp.eq.s32.totalorder %s28, 0
    %p61 = por %p59, %p60
    %p62 = scmp.ne.s32.totalorder %s48, %s49
    %p63 = scmp.eq.s32.totalorder %s29, 3
    %p64 = por %p62, %p63
    %p66 = scmp.ne.s32.totalorder %s49, %s65
    %p67 = scmp.eq.s32.totalorder %s29, 0
    %p68 = por %p66, %p67
    %s69 = ssub.s32 %s30, %s42
    %p70 = scmp.eq.s32.totalorder %s69, 0
    %s72 = sadd.s32 %s71, 1
    %s73 = scalar_select %p70, %s71, %s72
    %p76 = pneg %p70
    %p77 = scmp.eq.s32.totalorder %s23, 3
    %p78 = por %p76, %p77
    %p79 = scmp.ne.s32.totalorder %s71, %s74
    %p80 = scmp.eq.s32.totalorder %s23, 0
    %p81 = por %p79, %p80
    %p82 = scmp.ne.s32.totalorder %s71, %s74
    %p83 = scmp.eq.s32.totalorder %s28, 3
    %p84 = por %p82, %p83
    %p85 = scmp.ne.s32.totalorder %s74, %s75
    %p86 = scmp.eq.s32.totalorder %s28, 0
    %p87 = por %p85, %p86
    %p88 = scmp.ne.s32.totalorder %s74, %s75
    %p89 = scmp.eq.s32.totalorder %s29, 3
    %p90 = por %p88, %p89
    %p92 = scmp.ne.s32.totalorder %s75, %s91
    %p93 = scmp.eq.s32.totalorder %s29, 0
    %p94 = por %p92, %p93
    %s95 = ssub.s32 %s31, %s38
    %p96 = scmp.eq.s32.totalorder %s95, 0
    %s98 = sadd.s32 %s97, 1
    %s99 = scalar_select %p96, %s97, %s98
    %p102 = pneg %p96
    %p103 = scmp.eq.s32.totalorder %s23, 3
    %p104 = por %p102, %p103
    %p105 = scmp.ne.s32.totalorder %s97, %s100
    %p106 = scmp.eq.s32.totalorder %s23, 0
    %p107 = por %p105, %p106
    %p108 = scmp.ne.s32.totalorder %s97, %s100
    %p109 = scmp.eq.s32.totalorder %s28, 3
    %p110 = por %p108, %p109
    %p111 = scmp.ne.s32.totalorder %s100, %s101
    %p112 = scmp.eq.s32.totalorder %s28, 0
    %p113 = por %p111, %p112
    %p114 = scmp.ne.s32.totalorder %s100, %s101
    %p115 = scmp.eq.s32.totalorder %s29, 3
    %p116 = por %p114, %p115
    %p118 = scmp.ne.s32.totalorder %s101, %s117
    %p119 = scmp.eq.s32.totalorder %s29, 0
    %p120 = por %p118, %p119
    %s121 = ssub.s32 %s31, %s38
    %p122 = scmp.eq.s32.totalorder %s121, 0
    %s124 = sadd.s32 %s123, 1
    %s125 = scalar_select %p122, %s123, %s124
    %p128 = pneg %p122
    %p129 = scmp.eq.s32.totalorder %s23, 3
    %p130 = por %p128, %p129
    %p131 = scmp.ne.s32.totalorder %s123, %s126
    %p132 = scmp.eq.s32.totalorder %s23, 0
    %p133 = por %p131, %p132
    %p134 = scmp.ne.s32.totalorder %s123, %s126
    %p135 = scmp.eq.s32.totalorder %s28, 3
    %p136 = por %p134, %p135
    %p137 = scmp.ne.s32.totalorder %s126, %s127
    %p138 = scmp.eq.s32.totalorder %s28, 0
    %p139 = por %p137, %p138
    %p140 = scmp.ne.s32.totalorder %s126, %s127
    %p141 = scmp.eq.s32.totalorder %s29, 3
    %p142 = por %p140, %p141
    %p144 = scmp.ne.s32.totalorder %s127, %s143
    %p145 = scmp.eq.s32.totalorder %s29, 0
    %p146 = por %p144, %p145
    %s147 = ssub.s32 %s31, %s38
    %p148 = scmp.eq.s32.totalorder %s147, 0
    %s150 = sadd.s32 %s149, 1
    %s151 = scalar_select %p148, %s149, %s150
    %p154 = pneg %p148
    %p155 = scmp.eq.s32.totalorder %s23, 3
    %p156 = por %p154, %p155
    %p157 = scmp.ne.s32.totalorder %s149, %s152
    %p158 = scmp.eq.s32.totalorder %s23, 0
    %p159 = por %p157, %p158
    %p160 = scmp.ne.s32.totalorder %s149, %s152
    %p161 = scmp.eq.s32.totalorder %s28, 3
    %p162 = por %p160, %p161
    %p163 = scmp.ne.s32.totalorder %s152, %s153
    %p164 = scmp.eq.s32.totalorder %s28, 0
    %p165 = por %p163, %p164
    %p166 = scmp.ne.s32.totalorder %s152, %s153
    %p167 = scmp.eq.s32.totalorder %s29, 3
    %p168 = por %p166, %p167
    %p170 = scmp.ne.s32.totalorder %s153, %s169
    %p171 = scmp.eq.s32.totalorder %s29, 0
    %p172 = por %p170, %p171
    %s173 = ssub.s32 %s31, %s38
    %p174 = scmp.eq.s32.totalorder %s173, 0
    %s176 = sadd.s32 %s175, 1
    %s177 = scalar_select %p174, %s175, %s176
    %p180 = pneg %p174
    %p181 = scmp.eq.s32.totalorder %s23, 3
    %p182 = por %p180, %p181
    %p183 = scmp.ne.s32.totalorder %s175, %s178
    %p184 = scmp.eq.s32.totalorder %s23, 0
    %p185 = por %p183, %p184
    %p186 = scmp.ne.s32.totalorder %s175, %s178
    %p187 = scmp.eq.s32.totalorder %s28, 3
    %p188 = por %p186, %p187
    %p189 = scmp.ne.s32.totalorder %s178, %s179
    %p190 = scmp.eq.s32.totalorder %s28, 0
    %p191 = por %p189, %p190
    %p192 = scmp.ne.s32.totalorder %s178, %s179
    %p193 = scmp.eq.s32.totalorder %s29, 3
    %p194 = por %p192, %p193
    %p196 = scmp.ne.s32.totalorder %s179, %s195
    %p197 = scmp.eq.s32.totalorder %s29, 0
    %p198 = por %p196, %p197
    %s199 = ssub.s32 %s31, %s38
    %p200 = scmp.eq.s32.totalorder %s199, 0
    %s202 = sadd.s32 %s201, 1
    %s203 = scalar_select %p200, %s201, %s202
    %p206 = pneg %p200
    %p207 = scmp.eq.s32.totalorder %s23, 3
    %p208 = por %p206, %p207
    %p209 = scmp.ne.s32.totalorder %s201, %s204
    %p210 = scmp.eq.s32.totalorder %s23, 0
    %p211 = por %p209, %p210
    %p212 = scmp.ne.s32.totalorder %s201, %s204
    %p213 = scmp.eq.s32.totalorder %s28, 3
    %p214 = por %p212, %p213
    %p215 = scmp.ne.s32.totalorder %s204, %s205
    %p216 = scmp.eq.s32.totalorder %s28, 0
    %p217 = por %p215, %p216
    %p218 = scmp.ne.s32.totalorder %s204, %s205
    %p219 = scmp.eq.s32.totalorder %s29, 3
    %p220 = por %p218, %p219
    %p222 = scmp.ne.s32.totalorder %s205, %s221
    %p223 = scmp.eq.s32.totalorder %s29, 0
    %p224 = por %p222, %p223
    %s225 = ssub.s32 %s31, %s38
    %p226 = scmp.eq.s32.totalorder %s225, 0
    %s228 = sadd.s32 %s227, 1
    %s229 = scalar_select %p226, %s227, %s228
    %p232 = pneg %p226
    %p233 = scmp.eq.s32.totalorder %s23, 3
    %p234 = por %p232, %p233
    %p235 = scmp.ne.s32.totalorder %s227, %s230
    %p236 = scmp.eq.s32.totalorder %s23, 0
    %p237 = por %p235, %p236
    %p238 = scmp.ne.s32.totalorder %s227, %s230
    %p239 = scmp.eq.s32.totalorder %s28, 3
    %p240 = por %p238, %p239
    %p241 = scmp.ne.s32.totalorder %s230, %s231
    %p242 = scmp.eq.s32.totalorder %s28, 0
    %p243 = por %p241, %p242
    %p244 = scmp.ne.s32.totalorder %s230, %s231
    %p245 = scmp.eq.s32.totalorder %s29, 3
    %p246 = por %p244, %p245
    %p248 = scmp.ne.s32.totalorder %s231, %s247
    %p249 = scmp.eq.s32.totalorder %s29, 0
    %p250 = por %p248, %p249
    %s251 = ssub.s32 %s31, %s38
    %p252 = scmp.eq.s32.totalorder %s251, 0
    %s254 = sadd.s32 %s253, 1
    %s255 = scalar_select %p252, %s253, %s254
    %p258 = pneg %p252
    %p259 = scmp.eq.s32.totalorder %s23, 3
    %p260 = por %p258, %p259
    %p261 = scmp.ne.s32.totalorder %s253, %s256
    %p262 = scmp.eq.s32.totalorder %s23, 0
    %p263 = por %p261, %p262
    %p264 = scmp.ne.s32.totalorder %s253, %s256
    %p265 = scmp.eq.s32.totalorder %s28, 3
    %p266 = por %p264, %p265
    %p267 = scmp.ne.s32.totalorder %s256, %s257
    %p268 = scmp.eq.s32.totalorder %s28, 0
    %p269 = por %p267, %p268
    %p270 = scmp.ne.s32.totalorder %s256, %s257
    %p271 = scmp.eq.s32.totalorder %s29, 3
    %p272 = por %p270, %p271
    %p274 = scmp.ne.s32.totalorder %s257, %s273
    %p275 = scmp.eq.s32.totalorder %s29, 0
    %p276 = por %p274, %p275
    %s277 = ssub.s32 %s31, %s38
    %p278 = scmp.eq.s32.totalorder %s277, 0
    %s280 = sadd.s32 %s279, 1
    %s281 = scalar_select %p278, %s279, %s280
    %p284 = pneg %p278
    %p285 = scmp.eq.s32.totalorder %s23, 3
    %p286 = por %p284, %p285
    %p287 = scmp.ne.s32.totalorder %s279, %s282
    %p288 = scmp.eq.s32.totalorder %s23, 0
    %p289 = por %p287, %p288
    %p290 = scmp.ne.s32.totalorder %s279, %s282
    %p291 = scmp.eq.s32.totalorder %s28, 3
    %p292 = por %p290, %p291
    %p293 = scmp.ne.s32.totalorder %s282, %s283
    %p294 = scmp.eq.s32.totalorder %s28, 0
    %p295 = por %p293, %p294
    %p296 = scmp.ne.s32.totalorder %s282, %s283
    %p297 = scmp.eq.s32.totalorder %s29, 3
    %p298 = por %p296, %p297
    %p300 = scmp.ne.s32.totalorder %s283, %s299
    %p301 = scmp.eq.s32.totalorder %s29, 0
    %p302 = por %p300, %p301
    %s303 = ssub.s32 %s31, %s38
    %p304 = scmp.eq.s32.totalorder %s303, 0
    %s306 = sadd.s32 %s305, 1
    %s307 = scalar_select %p304, %s305, %s306
    %p310 = pneg %p304
    %p311 = scmp.eq.s32.totalorder %s23, 3
    %p312 = por %p310, %p311
    %p313 = scmp.ne.s32.totalorder %s305, %s308
    %p314 = scmp.eq.s32.totalorder %s23, 0
    %p315 = por %p313, %p314
    %p316 = scmp.ne.s32.totalorder %s305, %s308
    %p317 = scmp.eq.s32.totalorder %s28, 3
    %p318 = por %p316, %p317
    %p319 = scmp.ne.s32.totalorder %s308, %s309
    %p320 = scmp.eq.s32.totalorder %s28, 0
    %p321 = por %p319, %p320
    %p322 = scmp.ne.s32.totalorder %s308, %s309
    %p323 = scmp.eq.s32.totalorder %s29, 3
    %p324 = por %p322, %p323
    %p326 = scmp.ne.s32.totalorder %s309, %s325
    %p327 = scmp.eq.s32.totalorder %s29, 0
    %p328 = por %p326, %p327
    %s329 = ssub.s32 %s31, %s38
    %p330 = scmp.eq.s32.totalorder %s329, 0
    %s332 = sadd.s32 %s331, 1
    %s333 = scalar_select %p330, %s331, %s332
    %p336 = pneg %p330
    %p337 = scmp.eq.s32.totalorder %s23, 3
    %p338 = por %p336, %p337
    %p339 = scmp.ne.s32.totalorder %s331, %s334
    %p340 = scmp.eq.s32.totalorder %s23, 0
    %p341 = por %p339, %p340
    %p342 = scmp.ne.s32.totalorder %s331, %s334
    %p343 = scmp.eq.s32.totalorder %s28, 3
    %p344 = por %p342, %p343
    %p345 = scmp.ne.s32.totalorder %s334, %s335
    %p346 = scmp.eq.s32.totalorder %s28, 0
    %p347 = por %p345, %p346
    %p348 = scmp.ne.s32.totalorder %s334, %s335
    %p349 = scmp.eq.s32.totalorder %s29, 3
    %p350 = por %p348, %p349
    %p352 = scmp.ne.s32.totalorder %s335, %s351
    %p353 = scmp.eq.s32.totalorder %s29, 0
    %p354 = por %p352, %p353
    %s355 = ssub.s32 %s31, %s38
    %p356 = scmp.eq.s32.totalorder %s355, 0
    %s358 = sadd.s32 %s357, 1
    %s359 = scalar_select %p356, %s357, %s358
    %p362 = pneg %p356
    %p363 = scmp.eq.s32.totalorder %s23, 3
    %p364 = por %p362, %p363
    %p365 = scmp.ne.s32.totalorder %s357, %s360
    %p366 = scmp.eq.s32.totalorder %s23, 0
    %p367 = por %p365, %p366
    %p368 = scmp.ne.s32.totalorder %s357, %s360
    %p369 = scmp.eq.s32.totalorder %s28, 3
    %p370 = por %p368, %p369
    %p371 = scmp.ne.s32.totalorder %s360, %s361
    %p372 = scmp.eq.s32.totalorder %s28, 0
    %p373 = por %p371, %p372
    %p374 = scmp.ne.s32.totalorder %s360, %s361
    %p375 = scmp.eq.s32.totalorder %s29, 3
    %p376 = por %p374, %p375
    %p378 = scmp.ne.s32.totalorder %s361, %s377
    %p379 = scmp.eq.s32.totalorder %s29, 0
    %p380 = por %p378, %p379
    %s381 = ssub.s32 %s31, %s38
    %p382 = scmp.eq.s32.totalorder %s381, 0
    %s384 = sadd.s32 %s383, 1
    %s385 = scalar_select %p382, %s383, %s384
    %p388 = pneg %p382
    %p389 = scmp.eq.s32.totalorder %s23, 3
    %p390 = por %p388, %p389
    %p391 = scmp.ne.s32.totalorder %s383, %s386
    %p392 = scmp.eq.s32.totalorder %s23, 0
    %p393 = por %p391, %p392
    %p394 = scmp.ne.s32.totalorder %s383, %s386
    %p395 = scmp.eq.s32.totalorder %s28, 3
    %p396 = por %p394, %p395
    %p397 = scmp.ne.s32.totalorder %s386, %s387
    %p398 = scmp.eq.s32.totalorder %s28, 0
    %p399 = por %p397, %p398
    %p400 = scmp.ne.s32.totalorder %s386, %s387
    %p401 = scmp.eq.s32.totalorder %s29, 3
    %p402 = por %p400, %p401
    %p404 = scmp.ne.s32.totalorder %s387, %s403
    %p405 = scmp.eq.s32.totalorder %s29, 0
    %p406 = por %p404, %p405
    %s408 = sadd.s32 %s407, 1
    %p411 = scmp.eq.s32.totalorder %s23, 3
    %p412 = scmp.ne.s32.totalorder %s407, %s409
    %p413 = scmp.eq.s32.totalorder %s23, 0
    %p414 = por %p412, %p413
    %p415 = scmp.ne.s32.totalorder %s407, %s409
    %p416 = scmp.eq.s32.totalorder %s28, 3
    %p417 = por %p415, %p416
    %p418 = scmp.ne.s32.totalorder %s409, %s410
    %p419 = scmp.eq.s32.totalorder %s28, 0
    %p420 = por %p418, %p419
    %p421 = scmp.ne.s32.totalorder %s409, %s410
    %p422 = scmp.eq.s32.totalorder %s29, 3
    %p423 = por %p421, %p422
    %p425 = scmp.ne.s32.totalorder %s410, %s424
    %p426 = scmp.eq.s32.totalorder %s29, 0
    %p427 = por %p425, %p426
    %s429 = sadd.s32 %s428, 1
    %p432 = scmp.eq.s32.totalorder %s23, 3
    %p433 = scmp.ne.s32.totalorder %s428, %s430
    %p434 = scmp.eq.s32.totalorder %s23, 0
    %p435 = por %p433, %p434
    %p436 = scmp.ne.s32.totalorder %s428, %s430
    %p437 = scmp.eq.s32.totalorder %s28, 3
    %p438 = por %p436, %p437
    %p439 = scmp.ne.s32.totalorder %s430, %s431
    %p440 = scmp.eq.s32.totalorder %s28, 0
    %p441 = por %p439, %p440
    %p442 = scmp.ne.s32.totalorder %s430, %s431
    %p443 = scmp.eq.s32.totalorder %s29, 3
    %p444 = por %p442, %p443
    %p446 = scmp.ne.s32.totalorder %s431, %s445
    %p447 = scmp.eq.s32.totalorder %s29, 0
    %p448 = por %p446, %p447
    %s450 = sadd.s32 %s449, 1
    %p453 = scmp.eq.s32.totalorder %s23, 3
    %p454 = scmp.ne.s32.totalorder %s449, %s451
    %p455 = scmp.eq.s32.totalorder %s23, 0
    %p456 = por %p454, %p455
    %p457 = scmp.ne.s32.totalorder %s449, %s451
    %p458 = scmp.eq.s32.totalorder %s28, 3
    %p459 = por %p457, %p458
    %p460 = scmp.ne.s32.totalorder %s451, %s452
    %p461 = scmp.eq.s32.totalorder %s28, 0
    %p462 = por %p460, %p461
    %p463 = scmp.ne.s32.totalorder %s451, %s452
    %p464 = scmp.eq.s32.totalorder %s29, 3
    %p465 = por %p463, %p464
    %p467 = scmp.ne.s32.totalorder %s452, %s466
    %p468 = scmp.eq.s32.totalorder %s29, 0
    %p469 = por %p467, %p468
    %s470 = ssub.s32 %s30, %s42
    %p471 = scmp.eq.s32.totalorder %s470, 0
    %s473 = sadd.s32 %s472, 1
    %s474 = scalar_select %p471, %s472, %s473
    %p477 = pneg %p471
    %p478 = scmp.eq.s32.totalorder %s23, 3
    %p479 = por %p477, %p478
    %p480 = scmp.ne.s32.totalorder %s472, %s475
    %p481 = scmp.eq.s32.totalorder %s23, 0
    %p482 = por %p480, %p481
    %p483 = scmp.ne.s32.totalorder %s472, %s475
    %p484 = scmp.eq.s32.totalorder %s28, 3
    %p485 = por %p483, %p484
    %p486 = scmp.ne.s32.totalorder %s475, %s476
    %p487 = scmp.eq.s32.totalorder %s28, 0
    %p488 = por %p486, %p487
    %p489 = scmp.ne.s32.totalorder %s475, %s476
    %p490 = scmp.eq.s32.totalorder %s29, 3
    %p491 = por %p489, %p490
    %p493 = scmp.ne.s32.totalorder %s476, %s492
    %p494 = scmp.eq.s32.totalorder %s29, 0
    %p495 = por %p493, %p494
    %p496 = scmp.le.s32.totalorder 1, %s23
    %p497 = scmp.lt.s32.totalorder %s23, 5
    %p498 = pnand %p496, %p497
    %p499 = pneg %p498
    // Predicated region
    $region9: #{encoder_forward_pallas.1} parent=5 // pred_check
      _
    $region10: #{encoder_forward_pallas.1} parent=5 // pred_check_branch
      %501 = sbr.rel (%p498) target = $region12
    $region11: #{encoder_forward_pallas.1} parent=5 // pred_region
      %s502 = ssub.s32 %s23, 1
      // Predicated region
      $region13: #{encoder_forward_pallas.1} parent=11 // pred_check
        %p503 = pneg %p420
      $region14: #{encoder_forward_pallas.1} parent=11 // pred_check_branch
        %505 = sbr.rel (%p503) target = $region16
      $region15: #{encoder_forward_pallas.1} parent=11 // pred_region
        _
      $region16: #{encoder_forward_pallas.1} parent=11 // pred_fallthru
        _
      // Predicated region
      $region17: #{encoder_forward_pallas.1} parent=11 // pred_check
        %p506 = pneg %p441
      $region18: #{encoder_forward_pallas.1} parent=11 // pred_check_branch
        %508 = sbr.rel (%p506) target = $region20
      $region19: #{encoder_forward_pallas.1} parent=11 // pred_region
        _
      $region20: #{encoder_forward_pallas.1} parent=11 // pred_fallthru
        _
      // Predicated region
      $region21: #{encoder_forward_pallas.1} parent=11 // pred_check
        %p509 = pneg %p462
      $region22: #{encoder_forward_pallas.1} parent=11 // pred_check_branch
        %511 = sbr.rel (%p509) target = $region24
      $region23: #{encoder_forward_pallas.1} parent=11 // pred_region
        _
      $region24: #{encoder_forward_pallas.1} parent=11 // pred_fallthru
        _
    $region12: #{encoder_forward_pallas.1} parent=5 // pred_fallthru
      _
    %p512 = scmp.lt.s32.totalorder %s23, 4
    // Predicated region
    $region25: #{encoder_forward_pallas.1} parent=5 // pred_check
      %p513 = pneg %p512
    $region26: #{encoder_forward_pallas.1} parent=5 // pred_check_branch
      %515 = sbr.rel (%p513) target = $region28
    $region27: #{encoder_forward_pallas.1} parent=5 // pred_region
      // Predicated region
      $region29: #{encoder_forward_pallas.1} parent=27 // pred_check
        %p516 = pneg %p55
      $region30: #{encoder_forward_pallas.1} parent=27 // pred_check_branch
        %518 = sbr.rel (%p516) target = $region32
      $region31: #{encoder_forward_pallas.1} parent=27 // pred_region
        %p519 = scmp.lt.s32.totalorder %s30, 1
        %s520 = scalar_select %p519, %s30, 1
        %s521 = smul.addr %s520, 8
        %s522 = scalar_lea.vmem %s0, %s521
      $region32: #{encoder_forward_pallas.1} parent=27 // pred_fallthru
        _
      // Predicated region
      $region33: #{encoder_forward_pallas.1} parent=27 // pred_check
        %p523 = pneg %p81
      $region34: #{encoder_forward_pallas.1} parent=27 // pred_check_branch
        %525 = sbr.rel (%p523) target = $region36
      $region35: #{encoder_forward_pallas.1} parent=27 // pred_region
        %p526 = scmp.lt.s32.totalorder %s30, 1
        %s527 = scalar_select %p526, %s30, 1
        %s528 = smul.addr %s527, 8
        %s529 = scalar_lea.vmem %s1, %s528
      $region36: #{encoder_forward_pallas.1} parent=27 // pred_fallthru
        _
      // Predicated region
      $region37: #{encoder_forward_pallas.1} parent=27 // pred_check
        %p530 = pneg %p107
      $region38: #{encoder_forward_pallas.1} parent=27 // pred_check_branch
        %532 = sbr.rel (%p530) target = $region40
      $region39: #{encoder_forward_pallas.1} parent=27 // pred_region
        %p533 = scmp.lt.s32.totalorder %s31, 1
        %s534 = scalar_select %p533, %s31, 1
        %s535 = smul.addr %s534, 4
        %s536 = smul.addr %s535, 4
        %s537 = scalar_lea.vmem %s2, %s536
      $region40: #{encoder_forward_pallas.1} parent=27 // pred_fallthru
        _
      // Predicated region
      $region41: #{encoder_forward_pallas.1} parent=27 // pred_check
        %p538 = pneg %p133
      $region42: #{encoder_forward_pallas.1} parent=27 // pred_check_branch
        %540 = sbr.rel (%p538) target = $region44
      $region43: #{encoder_forward_pallas.1} parent=27 // pred_region
        %p541 = scmp.lt.s32.totalorder %s31, 1
        %s542 = scalar_select %p541, %s31, 1
        %s543 = scalar_lea.vmem %s3, %s542
      $region44: #{encoder_forward_pallas.1} parent=27 // pred_fallthru
        _
      // Predicated region
      $region45: #{encoder_forward_pallas.1} parent=27 // pred_check
        %p544 = pneg %p159
      $region46: #{encoder_forward_pallas.1} parent=27 // pred_check_branch
        %546 = sbr.rel (%p544) target = $region48
      $region47: #{encoder_forward_pallas.1} parent=27 // pred_region
        %p547 = scmp.lt.s32.totalorder %s31, 1
        %s548 = scalar_select %p547, %s31, 1
        %s549 = smul.addr %s548, 4
        %s550 = smul.addr %s549, 4
        %s551 = scalar_lea.vmem %s4, %s550
      $region48: #{encoder_forward_pallas.1} parent=27 // pred_fallthru
        _
      // Predicated region
      $region49: #{encoder_forward_pallas.1} parent=27 // pred_check
        %p552 = pneg %p185
      $region50: #{encoder_forward_pallas.1} parent=27 // pred_check_branch
        %554 = sbr.rel (%p552) target = $region52
      $region51: #{encoder_forward_pallas.1} parent=27 // pred_region
        %p555 = scmp.lt.s32.totalorder %s31, 1
        %s556 = scalar_select %p555, %s31, 1
        %s557 = scalar_lea.vmem %s5, %s556
      $region52: #{encoder_forward_pallas.1} parent=27 // pred_fallthru
        _
      // Predicated region
      $region53: #{encoder_forward_pallas.1} parent=27 // pred_check
        %p558 = pneg %p211
      $region54: #{encoder_forward_pallas.1} parent=27 // pred_check_branch
        %560 = sbr.rel (%p558) target = $region56
      $region55: #{encoder_forward_pallas.1} parent=27 // pred_region
        %p561 = scmp.lt.s32.totalorder %s31, 1
        %s562 = scalar_select %p561, %s31, 1
        %s563 = scalar_lea.vmem %s6, %s562
      $region56: #{encoder_forward_pallas.1} parent=27 // pred_fallthru
        _
      // Predicated region
      $region57: #{encoder_forward_pallas.1} parent=27 // pred_check
        %p564 = pneg %p237
      $region58: #{encoder_forward_pallas.1} parent=27 // pred_check_branch
        %566 = sbr.rel (%p564) target = $region60
      $region59: #{encoder_forward_pallas.1} parent=27 // pred_region
        %p567 = scmp.lt.s32.totalorder %s31, 1
        %s568 = scalar_select %p567, %s31, 1
        %s569 = scalar_lea.vmem %s7, %s568
      $region60: #{encoder_forward_pallas.1} parent=27 // pred_fallthru
        _
      // Predicated region
      $region61: #{encoder_forward_pallas.1} parent=27 // pred_check
        %p570 = pneg %p263
      $region62: #{encoder_forward_pallas.1} parent=27 // pred_check_branch
        %572 = sbr.rel (%p570) target = $region64
      $region63: #{encoder_forward_pallas.1} parent=27 // pred_region
        %p573 = scmp.lt.s32.totalorder %s31, 1
        %s574 = scalar_select %p573, %s31, 1
        %s575 = smul.addr %s574, 4
        %s576 = smul.addr %s575, 4
        %s577 = scalar_lea.vmem %s8, %s576
      $region64: #{encoder_forward_pallas.1} parent=27 // pred_fallthru
        _
      // Predicated region
      $region65: #{encoder_forward_pallas.1} parent=27 // pred_check
        %p578 = pneg %p289
      $region66: #{encoder_forward_pallas.1} parent=27 // pred_check_branch
        %580 = sbr.rel (%p578) target = $region68
      $region67: #{encoder_forward_pallas.1} parent=27 // pred_region
        %p581 = scmp.lt.s32.totalorder %s31, 1
        %s582 = scalar_select %p581, %s31, 1
        %s583 = scalar_lea.vmem %s9, %s582
      $region68: #{encoder_forward_pallas.1} parent=27 // pred_fallthru
        _
      // Predicated region
      $region69: #{encoder_forward_pallas.1} parent=27 // pred_check
        %p584 = pneg %p315
      $region70: #{encoder_forward_pallas.1} parent=27 // pred_check_branch
        %586 = sbr.rel (%p584) target = $region72
      $region71: #{encoder_forward_pallas.1} parent=27 // pred_region
        %p587 = scmp.lt.s32.totalorder %s31, 1
        %s588 = scalar_select %p587, %s31, 1
        %s589 = smul.addr %s588, 8
        %s590 = smul.addr %s589, 4
        %s591 = scalar_lea.vmem %s10, %s590
      $region72: #{encoder_forward_pallas.1} parent=27 // pred_fallthru
        _
      // Predicated region
      $region73: #{encoder_forward_pallas.1} parent=27 // pred_check
        %p592 = pneg %p341
      $region74: #{encoder_forward_pallas.1} parent=27 // pred_check_branch
        %594 = sbr.rel (%p592) target = $region76
      $region75: #{encoder_forward_pallas.1} parent=27 // pred_region
        %p595 = scmp.lt.s32.totalorder %s31, 1
        %s596 = scalar_select %p595, %s31, 1
        %s597 = scalar_lea.vmem %s11, %s596
      $region76: #{encoder_forward_pallas.1} parent=27 // pred_fallthru
        _
      // Predicated region
      $region77: #{encoder_forward_pallas.1} parent=27 // pred_check
        %p598 = pneg %p367
      $region78: #{encoder_forward_pallas.1} parent=27 // pred_check_branch
        %600 = sbr.rel (%p598) target = $region80
      $region79: #{encoder_forward_pallas.1} parent=27 // pred_region
        %p601 = scmp.lt.s32.totalorder %s31, 1
        %s602 = scalar_select %p601, %s31, 1
        %s603 = scalar_lea.vmem %s12, %s602
      $region80: #{encoder_forward_pallas.1} parent=27 // pred_fallthru
        _
      // Predicated region
      $region81: #{encoder_forward_pallas.1} parent=27 // pred_check
        %p604 = pneg %p393
      $region82: #{encoder_forward_pallas.1} parent=27 // pred_check_branch
        %606 = sbr.rel (%p604) target = $region84
      $region83: #{encoder_forward_pallas.1} parent=27 // pred_region
        %p607 = scmp.lt.s32.totalorder %s31, 1
        %s608 = scalar_select %p607, %s31, 1
        %s609 = scalar_lea.vmem %s13, %s608
      $region84: #{encoder_forward_pallas.1} parent=27 // pred_fallthru
        _
    $region28: #{encoder_forward_pallas.1} parent=5 // pred_fallthru
      _
    %p610 = scmp.le.s32.totalorder 1, %s23
    %p611 = scmp.lt.s32.totalorder %s23, 5
    %p612 = pnand %p610, %p611
    %p613 = pneg %p612
    // Predicated region
    $region85: #{encoder_forward_pallas.1} parent=5 // pred_check
      _
    $region86: #{encoder_forward_pallas.1} parent=5 // pred_check_branch
      %615 = sbr.rel (%p612) target = $region88
    $region87: #{encoder_forward_pallas.1} parent=5 // pred_region
      %s616 = ssub.s32 %s23, 1
      %p617 = scmp.lt.s32.totalorder %s32, 1
      %s618 = scalar_select %p617, %s32, 1
      %s619 = smul.addr %s618, 8
      %s620 = scalar_lea.vmem %s0, %s619
      %p621 = pneg %p61
      %p622 = pneg %p58
      %p623 = scmp.lt.s32.totalorder %s32, 1
      %s624 = scalar_select %p623, %s32, 1
      %s625 = smul.addr %s624, 8
      %s626 = scalar_lea.vmem %s1, %s625
      %p627 = pneg %p87
      %p628 = pneg %p84
      %p629 = scmp.lt.s32.totalorder %s33, 1
      %s630 = scalar_select %p629, %s33, 1
      %s631 = smul.addr %s630, 4
      %s632 = smul.addr %s631, 4
      %s633 = scalar_lea.vmem %s2, %s632
      %p634 = pneg %p113
      %p635 = pneg %p110
      %p636 = scmp.lt.s32.totalorder %s33, 1
      %s637 = scalar_select %p636, %s33, 1
      %s638 = scalar_lea.vmem %s3, %s637
      %p639 = pneg %p139
      %p640 = pneg %p136
      %p641 = scmp.lt.s32.totalorder %s33, 1
      %s642 = scalar_select %p641, %s33, 1
      %s643 = smul.addr %s642, 4
      %s644 = smul.addr %s643, 4
      %s645 = scalar_lea.vmem %s4, %s644
      %p646 = pneg %p165
      %p647 = pneg %p162
      %p648 = scmp.lt.s32.totalorder %s33, 1
      %s649 = scalar_select %p648, %s33, 1
      %s650 = scalar_lea.vmem %s5, %s649
      %p651 = pneg %p191
      %p652 = pneg %p188
      %p653 = scmp.lt.s32.totalorder %s33, 1
      %s654 = scalar_select %p653, %s33, 1
      %s655 = scalar_lea.vmem %s6, %s654
      %p656 = pneg %p217
      %p657 = pneg %p214
      %p658 = scmp.lt.s32.totalorder %s33, 1
      %s659 = scalar_select %p658, %s33, 1
      %s660 = scalar_lea.vmem %s7, %s659
      %p661 = pneg %p243
      %p662 = pneg %p240
      %p663 = scmp.lt.s32.totalorder %s33, 1
      %s664 = scalar_select %p663, %s33, 1
      %s665 = smul.addr %s664, 4
      %s666 = smul.addr %s665, 4
      %s667 = scalar_lea.vmem %s8, %s666
      %p668 = pneg %p269
      %p669 = pneg %p266
      %p670 = scmp.lt.s32.totalorder %s33, 1
      %s671 = scalar_select %p670, %s33, 1
      %s672 = scalar_lea.vmem %s9, %s671
      %p673 = pneg %p295
      %p674 = pneg %p292
      %p675 = scmp.lt.s32.totalorder %s33, 1
      %s676 = scalar_select %p675, %s33, 1
      %s677 = smul.addr %s676, 8
      %s678 = smul.addr %s677, 4
      %s679 = scalar_lea.vmem %s10, %s678
      %p680 = pneg %p321
      %p681 = pneg %p318
      %p682 = scmp.lt.s32.totalorder %s33, 1
      %s683 = scalar_select %p682, %s33, 1
      %s684 = scalar_lea.vmem %s11, %s683
      %p685 = pneg %p347
      %p686 = pneg %p344
      %p687 = scmp.lt.s32.totalorder %s33, 1
      %s688 = scalar_select %p687, %s33, 1
      %s689 = scalar_lea.vmem %s12, %s688
      %p690 = pneg %p373
      %p691 = pneg %p370
      %p692 = scmp.lt.s32.totalorder %s33, 1
      %s693 = scalar_select %p692, %s33, 1
      %s694 = scalar_lea.vmem %s13, %s693
      %p695 = pneg %p399
      %p696 = pneg %p396
      %p697 = pneg %p420
      %p698 = pneg %p417
      %p699 = pneg %p441
      %p700 = pneg %p438
      %p701 = pneg %p462
      %p702 = pneg %p459
      %p703 = pneg %p488
      %p704 = pneg %p485
      %p705 = scmp.lt.s32.totalorder %s32, 1
      %s706 = scalar_select %p705, %s32, 1
      %s707 = scalar_lea.vmem %s17, %s706
      %p708 = scmp.lt.s32.totalorder %s32, 1
      %s709 = scalar_select %p708, %s32, 1
      %s710 = smul.addr %s709, 8
      %s711 = scalar_lea.vmem %s0, %s710
      %p712 = scmp.lt.s32.totalorder %s32, 1
      %s713 = scalar_select %p712, %s32, 1
      %s714 = smul.addr %s713, 8
      %s715 = scalar_lea.vmem %s1, %s714
      %p716 = scmp.lt.s32.totalorder %s33, 1
      %s717 = scalar_select %p716, %s33, 1
      %s718 = smul.addr %s717, 4
      %s719 = smul.addr %s718, 4
      %s720 = scalar_lea.vmem %s2, %s719
      %p721 = scmp.lt.s32.totalorder %s33, 1
      %s722 = scalar_select %p721, %s33, 1
      %s723 = scalar_lea.vmem %s3, %s722
      %p724 = scmp.lt.s32.totalorder %s33, 1
      %s725 = scalar_select %p724, %s33, 1
      %s726 = smul.addr %s725, 4
      %s727 = smul.addr %s726, 4
      %s728 = scalar_lea.vmem %s4, %s727
      %p729 = scmp.lt.s32.totalorder %s33, 1
      %s730 = scalar_select %p729, %s33, 1
      %s731 = scalar_lea.vmem %s5, %s730
      %p732 = scmp.lt.s32.totalorder %s33, 1
      %s733 = scalar_select %p732, %s33, 1
      %s734 = scalar_lea.vmem %s6, %s733
      %p735 = scmp.lt.s32.totalorder %s33, 1
      %s736 = scalar_select %p735, %s33, 1
      %s737 = scalar_lea.vmem %s7, %s736
      %p738 = scmp.lt.s32.totalorder %s33, 1
      %s739 = scalar_select %p738, %s33, 1
      %s740 = smul.addr %s739, 4
      %s741 = smul.addr %s740, 4
      %s742 = scalar_lea.vmem %s8, %s741
      %p743 = scmp.lt.s32.totalorder %s33, 1
      %s744 = scalar_select %p743, %s33, 1
      %s745 = scalar_lea.vmem %s9, %s744
      %p746 = scmp.lt.s32.totalorder %s33, 1
      %s747 = scalar_select %p746, %s33, 1
      %s748 = smul.addr %s747, 8
      %s749 = smul.addr %s748, 4
      %s750 = scalar_lea.vmem %s10, %s749
      %p751 = scmp.lt.s32.totalorder %s33, 1
      %s752 = scalar_select %p751, %s33, 1
      %s753 = scalar_lea.vmem %s11, %s752
      %p754 = scmp.lt.s32.totalorder %s33, 1
      %s755 = scalar_select %p754, %s33, 1
      %s756 = scalar_lea.vmem %s12, %s755
      %p757 = scmp.lt.s32.totalorder %s33, 1
      %s758 = scalar_select %p757, %s33, 1
      %s759 = scalar_lea.vmem %s13, %s758
      %p760 = scmp.lt.s32.totalorder %s32, 1
      %s761 = scalar_select %p760, %s32, 1
      %s762 = scalar_lea.vmem %s17, %s761
      %p764 = scmp.eq.s32.totalorder %s33, 0
      // Predicated region
      $region89: #{encoder_forward_pallas.1} parent=87 // pred_check
        %p765 = pneg %p764
      $region90: #{encoder_forward_pallas.1} parent=87 // pred_check_branch
        %767 = sbr.rel (%p765) target = $region92
      $region91: #{encoder_forward_pallas.1} parent=87 // pred_region
        %v768 = vld [vmem:[%s711] sm:$0xff]
        %vm769 = vcmask 261120
        %770 = vst.msk [vmem:[#allocation2] sm:$0xff] %vm769, %v768
      $region92: #{encoder_forward_pallas.1} parent=87 // pred_fallthru
        _
      %v771 = vld [vmem:[#allocation2] sm:$0xff]
      %v772 = vld [vmem:[%s715] sm:$0xff]
      %vm773 = vcmp.gt.f32.partialorder %v772, 0.5
      %v774 = vpack.c.bf16 %v771, %v771
      %v775 = vld [vmem:[%s720] sm:$0xf]
      %v776 = vld [vmem:[%s720 + $0x4] sm:$0xf]
      %v777 = vld [vmem:[%s720 + $0x8] sm:$0xf]
      %v778 = vld [vmem:[%s720 + $0xc] sm:$0xf]
      %v779 = vld [vmem:[%s723] sm:$0x1]
      %v781 = vlaneseq
      %v782 = vshrl.u32 %v781, 7
      %v783 = vsub.s32 0, %v782
      %v784 = vrot.slane %v779, %v783
      %v790 = vunpack.c.l.b16 %v775
      %v791 = vunpack.c.l.b16 %v776
      %v792 = vunpack.c.l.b16 %v777
      %v793 = vunpack.c.l.b16 %v778
      %v794 = vpack.c.b16 %v791, %v790
      %v795 = vpack.c.b16 %v793, %v792
      %vm798 = vcmask 261120
      %v800 = vsel %vm798, %v774, 0
      %802 = vmatprep.subr.bf16.mxu0 0
      %803 = vmatpush1.bf16.msra.mxu0 0
      %804 = vmatprep.subr.bf16.mxu0 0
      %805 = vmatpush1.bf16.msra.mxu0 0
      %806 = vmatprep.subr.bf16.mxu0 0
      %807 = vmatpush1.bf16.msra.mxu0 0
      %808 = vmatprep.subr.bf16.mxu0 0
      %809 = vmatpush1.bf16.msra.mxu0 0
      %810 = vmatprep.subr.bf16.mxu0 0
      %811 = vmatpush1.bf16.msra.mxu0 0
      %812 = vmatprep.subr.bf16.mxu0 0
      %813 = vmatpush1.bf16.msra.mxu0 0
      %814 = vmatprep.subr.bf16.mxu0 0
      %815 = vmatpush1.bf16.msra.mxu0 %v795
      %816 = vmatprep.subr.bf16.mxu0 0
      %817 = vmatpush1.bf16.msra.mxu0 %v794
      %818 = vmatprep.subr.bf16.mxu0 0
      %819 = vmatpush2.bf16.msra.mxu0 0
      %820 = vmatprep.subr.bf16.mxu0 0
      %821 = vmatpush2.bf16.msra.mxu0 0
      %822 = vmatprep.subr.bf16.mxu0 0
      %823 = vmatpush2.bf16.msra.mxu0 0
      %824 = vmatprep.subr.bf16.mxu0 0
      %825 = vmatpush2.bf16.msra.mxu0 0
      %826 = vmatprep.subr.bf16.mxu0 0
      %827 = vmatpush2.bf16.msra.mxu0 0
      %828 = vmatprep.subr.bf16.mxu0 0
      %829 = vmatpush2.bf16.msra.mxu0 0
      %830 = vmatprep.subr.bf16.mxu0 0
      %831 = vmatpush2.bf16.msra.mxu0 0
      %832 = vmatprep.subr.bf16.mxu0 0
      %833 = vmatpush2.bf16.msra.mxu0 0
      %834 = vmatprep.mubr.bf16.mxu0 0
      %835 = vmatmul.mubr.bf16.gmra.mxu0 %v800
      %v836 = vpop.f32.mrf.mxu0
      %v837 = vadd.f32 %v784, %v836
      %v838 = vpop.f32.mrf.mxu0
      %v839 = vpop.f32.mrf.mxu0
      %v840 = vpop.f32.mrf.mxu0
      %841 = vdwg.mxu0
      %843 = vrot.lane.b32.xlu0 %v837, 120
      %v844 = vpop.permute.xlu0 %843
      %846 = vrot.lane.b32.xlu0 %v837, 112
      %v847 = vpop.permute.xlu0 %846
      %849 = vrot.lane.b32.xlu0 %v837, 104
      %v850 = vpop.permute.xlu0 %849
      %v852 = vpack.c.bf16 %v837, %v837
      %v853 = vpack.c.bf16 %v844, %v844
      %v854 = vpack.c.bf16 %v847, %v847
      %v855 = vpack.c.bf16 %v850, %v850
      %857 = vrot.lane.b32.xlu0 %v852, 96
      %v858 = vpop.permute.xlu0 %857
      %vm859 = vcmask 64512
      %v861 = vsel %vm859, %v852, 0
      %v864 = vsel %vm859, %v858, 0
      %866 = vmatprep.subr.bf16.mxu0 0
      %867 = vmatpush1.bf16.xpose.msra.mxu0 0
      %868 = vmatprep.subr.bf16.mxu0 0
      %869 = vmatpush1.bf16.xpose.msra.mxu0 0
      %870 = vmatprep.subr.bf16.mxu0 0
      %871 = vmatpush1.bf16.xpose.msra.mxu0 0
      %872 = vmatprep.subr.bf16.mxu0 0
      %873 = vmatpush1.bf16.xpose.msra.mxu0 0
      %874 = vmatprep.subr.bf16.mxu0 0
      %875 = vmatpush1.bf16.xpose.msra.mxu0 0
      %876 = vmatprep.subr.bf16.mxu0 0
      %877 = vmatpush1.bf16.xpose.msra.mxu0 0
      %878 = vmatprep.subr.bf16.mxu0 0
      %879 = vmatpush1.bf16.xpose.msra.mxu0 0
      %880 = vmatprep.subr.bf16.mxu0 0
      %881 = vmatpush1.bf16.xpose.msra.mxu0 %v864
      %882 = vmatprep.subr.bf16.mxu0 0
      %883 = vmatpush2.bf16.xpose.msra.mxu0 0
      %884 = vmatprep.subr.bf16.mxu0 0
      %885 = vmatpush2.bf16.xpose.msra.mxu0 0
      %886 = vmatprep.subr.bf16.mxu0 0
      %887 = vmatpush2.bf16.xpose.msra.mxu0 0
      %888 = vmatprep.subr.bf16.mxu0 0
      %889 = vmatpush2.bf16.xpose.msra.mxu0 0
      %890 = vmatprep.subr.bf16.mxu0 0
      %891 = vmatpush2.bf16.xpose.msra.mxu0 0
      %892 = vmatprep.subr.bf16.mxu0 0
      %893 = vmatpush2.bf16.xpose.msra.mxu0 0
      %894 = vmatprep.subr.bf16.mxu0 0
      %895 = vmatpush2.bf16.xpose.msra.mxu0 0
      %896 = vmatprep.subr.bf16.mxu0 0
      %897 = vmatpush2.bf16.xpose.msra.mxu0 0
      %898 = vmatprep.mubr.bf16.mxu0 0
      %899 = vmatmul.mubr.bf16.gmra.mxu0 %v861
      %v900 = vpop.f32.mrf.mxu0
      %v901 = vadd.f32 0.0, %v900
      %v902 = vpop.f32.mrf.mxu0
      %v903 = vpop.f32.mrf.mxu0
      %v904 = vpop.f32.mrf.mxu0
      %905 = vdwg.mxu0
      %907 = vrot.lane.b32.xlu0 %v853, 96
      %v908 = vpop.permute.xlu0 %907
      %v910 = vsel %vm859, %v853, 0
      %v913 = vsel %vm859, %v908, 0
      %915 = vmatprep.subr.bf16.mxu0 0
      %916 = vmatpush1.bf16.xpose.msra.mxu0 0
      %917 = vmatprep.subr.bf16.mxu0 0
      %918 = vmatpush1.bf16.xpose.msra.mxu0 0
      %919 = vmatprep.subr.bf16.mxu0 0
      %920 = vmatpush1.bf16.xpose.msra.mxu0 0
      %921 = vmatprep.subr.bf16.mxu0 0
      %922 = vmatpush1.bf16.xpose.msra.mxu0 0
      %923 = vmatprep.subr.bf16.mxu0 0
      %924 = vmatpush1.bf16.xpose.msra.mxu0 0
      %925 = vmatprep.subr.bf16.mxu0 0
      %926 = vmatpush1.bf16.xpose.msra.mxu0 0
      %927 = vmatprep.subr.bf16.mxu0 0
      %928 = vmatpush1.bf16.xpose.msra.mxu0 0
      %929 = vmatprep.subr.bf16.mxu0 0
      %930 = vmatpush1.bf16.xpose.msra.mxu0 %v913
      %931 = vmatprep.subr.bf16.mxu0 0
      %932 = vmatpush2.bf16.xpose.msra.mxu0 0
      %933 = vmatprep.subr.bf16.mxu0 0
      %934 = vmatpush2.bf16.xpose.msra.mxu0 0
      %935 = vmatprep.subr.bf16.mxu0 0
      %936 = vmatpush2.bf16.xpose.msra.mxu0 0
      %937 = vmatprep.subr.bf16.mxu0 0
      %938 = vmatpush2.bf16.xpose.msra.mxu0 0
      %939 = vmatprep.subr.bf16.mxu0 0
      %940 = vmatpush2.bf16.xpose.msra.mxu0 0
      %941 = vmatprep.subr.bf16.mxu0 0
      %942 = vmatpush2.bf16.xpose.msra.mxu0 0
      %943 = vmatprep.subr.bf16.mxu0 0
      %944 = vmatpush2.bf16.xpose.msra.mxu0 0
      %945 = vmatprep.subr.bf16.mxu0 0
      %946 = vmatpush2.bf16.xpose.msra.mxu0 0
      %947 = vmatprep.mubr.bf16.mxu0 0
      %948 = vmatmul.mubr.bf16.gmra.mxu0 %v910
      %v949 = vpop.f32.mrf.mxu0
      %v950 = vadd.f32 0.0, %v949
      %v951 = vpop.f32.mrf.mxu0
      %v952 = vpop.f32.mrf.mxu0
      %v953 = vpop.f32.mrf.mxu0
      %954 = vdwg.mxu0
      %956 = vrot.lane.b32.xlu0 %v854, 96
      %v957 = vpop.permute.xlu0 %956
      %v959 = vsel %vm859, %v854, 0
      %v962 = vsel %vm859, %v957, 0
      %964 = vmatprep.subr.bf16.mxu0 0
      %965 = vmatpush1.bf16.xpose.msra.mxu0 0
      %966 = vmatprep.subr.bf16.mxu0 0
      %967 = vmatpush1.bf16.xpose.msra.mxu0 0
      %968 = vmatprep.subr.bf16.mxu0 0
      %969 = vmatpush1.bf16.xpose.msra.mxu0 0
      %970 = vmatprep.subr.bf16.mxu0 0
      %971 = vmatpush1.bf16.xpose.msra.mxu0 0
      %972 = vmatprep.subr.bf16.mxu0 0
      %973 = vmatpush1.bf16.xpose.msra.mxu0 0
      %974 = vmatprep.subr.bf16.mxu0 0
      %975 = vmatpush1.bf16.xpose.msra.mxu0 0
      %976 = vmatprep.subr.bf16.mxu0 0
      %977 = vmatpush1.bf16.xpose.msra.mxu0 0
      %978 = vmatprep.subr.bf16.mxu0 0
      %979 = vmatpush1.bf16.xpose.msra.mxu0 %v962
      %980 = vmatprep.subr.bf16.mxu0 0
      %981 = vmatpush2.bf16.xpose.msra.mxu0 0
      %982 = vmatprep.subr.bf16.mxu0 0
      %983 = vmatpush2.bf16.xpose.msra.mxu0 0
      %984 = vmatprep.subr.bf16.mxu0 0
      %985 = vmatpush2.bf16.xpose.msra.mxu0 0
      %986 = vmatprep.subr.bf16.mxu0 0
      %987 = vmatpush2.bf16.xpose.msra.mxu0 0
      %988 = vmatprep.subr.bf16.mxu0 0
      %989 = vmatpush2.bf16.xpose.msra.mxu0 0
      %990 = vmatprep.subr.bf16.mxu0 0
      %991 = vmatpush2.bf16.xpose.msra.mxu0 0
      %992 = vmatprep.subr.bf16.mxu0 0
      %993 = vmatpush2.bf16.xpose.msra.mxu0 0
      %994 = vmatprep.subr.bf16.mxu0 0
      %995 = vmatpush2.bf16.xpose.msra.mxu0 0
      %996 = vmatprep.mubr.bf16.mxu0 0
      %997 = vmatmul.mubr.bf16.gmra.mxu0 %v959
      %v998 = vpop.f32.mrf.mxu0
      %v999 = vadd.f32 0.0, %v998
      %v1000 = vpop.f32.mrf.mxu0
      %v1001 = vpop.f32.mrf.mxu0
      %v1002 = vpop.f32.mrf.mxu0
      %1003 = vdwg.mxu0
      %1005 = vrot.lane.b32.xlu0 %v855, 96
      %v1006 = vpop.permute.xlu0 %1005
      %v1008 = vsel %vm859, %v855, 0
      %v1011 = vsel %vm859, %v1006, 0
      %1013 = vmatprep.subr.bf16.mxu0 0
      %1014 = vmatpush1.bf16.xpose.msra.mxu0 0
      %1015 = vmatprep.subr.bf16.mxu0 0
      %1016 = vmatpush1.bf16.xpose.msra.mxu0 0
      %1017 = vmatprep.subr.bf16.mxu0 0
      %1018 = vmatpush1.bf16.xpose.msra.mxu0 0
      %1019 = vmatprep.subr.bf16.mxu0 0
      %1020 = vmatpush1.bf16.xpose.msra.mxu0 0
      %1021 = vmatprep.subr.bf16.mxu0 0
      %1022 = vmatpush1.bf16.xpose.msra.mxu0 0
      %1023 = vmatprep.subr.bf16.mxu0 0
      %1024 = vmatpush1.bf16.xpose.msra.mxu0 0
      %1025 = vmatprep.subr.bf16.mxu0 0
      %1026 = vmatpush1.bf16.xpose.msra.mxu0 0
      %1027 = vmatprep.subr.bf16.mxu0 0
      %1028 = vmatpush1.bf16.xpose.msra.mxu0 %v1011
      %1029 = vmatprep.subr.bf16.mxu0 0
      %1030 = vmatpush2.bf16.xpose.msra.mxu0 0
      %1031 = vmatprep.subr.bf16.mxu0 0
      %1032 = vmatpush2.bf16.xpose.msra.mxu0 0
      %1033 = vmatprep.subr.bf16.mxu0 0
      %1034 = vmatpush2.bf16.xpose.msra.mxu0 0
      %1035 = vmatprep.subr.bf16.mxu0 0
      %1036 = vmatpush2.bf16.xpose.msra.mxu0 0
      %1037 = vmatprep.subr.bf16.mxu0 0
      %1038 = vmatpush2.bf16.xpose.msra.mxu0 0
      %1039 = vmatprep.subr.bf16.mxu0 0
      %1040 = vmatpush2.bf16.xpose.msra.mxu0 0
      %1041 = vmatprep.subr.bf16.mxu0 0
      %1042 = vmatpush2.bf16.xpose.msra.mxu0 0
      %1043 = vmatprep.subr.bf16.mxu0 0
      %1044 = vmatpush2.bf16.xpose.msra.mxu0 0
      %1045 = vmatprep.mubr.bf16.mxu0 0
      %1046 = vmatmul.mubr.bf16.gmra.mxu0 %v1008
      %v1047 = vpop.f32.mrf.mxu0
      %v1048 = vadd.f32 0.0, %v1047
      %v1049 = vpop.f32.mrf.mxu0
      %v1050 = vpop.f32.mrf.mxu0
      %v1051 = vpop.f32.mrf.mxu0
      %1052 = vdwg.mxu0
      %v1053 = vsel %vm773, 1, 0
      %vm1054 = vcmp.eq.s32.totalorder %v1053, 1
      %v1055 = vsel %vm1054, %v901, -1e+30
      %v1056 = vsel %vm1054, %v950, -1e+30
      %v1057 = vsel %vm1054, %v999, -1e+30
      %v1058 = vsel %vm1054, %v1048, -1e+30
      %v1059 = vsel %vm859, %v1055, -inf
      %1060 = vmax.xlane.f32.xlu0 %v1059
      %v1061 = vpop.xlane.xlu0 %1060
      %v1062 = vsel %vm859, %v1056, -inf
      %1063 = vmax.xlane.f32.xlu0 %v1062
      %v1064 = vpop.xlane.xlu0 %1063
      %v1065 = vsel %vm859, %v1057, -inf
      %1066 = vmax.xlane.f32.xlu0 %v1065
      %v1067 = vpop.xlane.xlu0 %1066
      %v1068 = vsel %vm859, %v1058, -inf
      %1069 = vmax.xlane.f32.xlu0 %v1068
      %v1070 = vpop.xlane.xlu0 %1069
      %v1071 = vsub.f32 %v1055, %v1061
      %v1072 = vsub.f32 %v1056, %v1064
      %v1073 = vsub.f32 %v1057, %v1067
      %v1074 = vsub.f32 %v1058, %v1070
      %v1075 = vmul.f32 %v1071, 1.442695
      %v1076 = vpow.pop %v1075
      %v1077 = vmul.f32 %v1072, 1.442695
      %v1078 = vpow.pop %v1077
      %v1079 = vmul.f32 %v1073, 1.442695
      %v1080 = vpow.pop %v1079
      %v1081 = vmul.f32 %v1074, 1.442695
      %v1082 = vpow.pop %v1081
      %v1083 = vsel %vm1054, %v1076, 0.0
      %v1084 = vsel %vm1054, %v1078, 0.0
      %v1085 = vsel %vm1054, %v1080, 0.0
      %v1086 = vsel %vm1054, %v1082, 0.0
      %v1087 = vsel %vm859, %v1083, 0.0
      %1088 = vadd.xlane.f32.xlu0 %v1087
      %v1089 = vpop.xlane.xlu0 %1088
      %v1090 = vsel %vm859, %v1084, 0.0
      %1091 = vadd.xlane.f32.xlu0 %v1090
      %v1092 = vpop.xlane.xlu0 %1091
      %v1093 = vsel %vm859, %v1085, 0.0
      %1094 = vadd.xlane.f32.xlu0 %v1093
      %v1095 = vpop.xlane.xlu0 %1094
      %v1096 = vsel %vm859, %v1086, 0.0
      %1097 = vadd.xlane.f32.xlu0 %v1096
      %v1098 = vpop.xlane.xlu0 %1097
      %vm1099 = vcmp.eq.f32.partialorder %v1089, 0.0
      %vm1100 = vcmp.eq.f32.partialorder %v1092, 0.0
      %vm1101 = vcmp.eq.f32.partialorder %v1095, 0.0
      %vm1102 = vcmp.eq.f32.partialorder %v1098, 0.0
      %v1103 = vsel %vm1099, 1.0, %v1089
      %v1104 = vsel %vm1100, 1.0, %v1092
      %v1105 = vsel %vm1101, 1.0, %v1095
      %v1106 = vsel %vm1102, 1.0, %v1098
      %v1107 = vrcp.pop %v1103
      %v1108 = vrcp.pop %v1104
      %v1109 = vrcp.pop %v1105
      %v1110 = vrcp.pop %v1106
      %v1111 = vmul.f32 %v1083, %v1107
      %v1112 = vmul.f32 %v1084, %v1108
      %v1113 = vmul.f32 %v1085, %v1109
      %v1114 = vmul.f32 %v1086, %v1110
      %v1115 = vpack.c.bf16 %v1111, %v1111
      %v1116 = vpack.c.bf16 %v1112, %v1112
      %v1117 = vpack.c.bf16 %v1113, %v1113
      %v1118 = vpack.c.bf16 %v1114, %v1114
      %1119 = vrot.lane.b32.xlu0 %v852, 64
      %v1120 = vpop.permute.xlu0 %1119
      %v1122 = vsel %vm859, %v1115, 0
      %vm1124 = vcmask 1043456
      %v1126 = vsel %vm1124, %v1120, 0
      %1128 = vmatprep.subr.bf16.mxu0 0
      %1129 = vmatpush1.bf16.msra.mxu0 0
      %1130 = vmatprep.subr.bf16.mxu0 0
      %1131 = vmatpush1.bf16.msra.mxu0 0
      %1132 = vmatprep.subr.bf16.mxu0 0
      %1133 = vmatpush1.bf16.msra.mxu0 0
      %1134 = vmatprep.subr.bf16.mxu0 0
      %1135 = vmatpush1.bf16.msra.mxu0 0
      %1136 = vmatprep.subr.bf16.mxu0 0
      %1137 = vmatpush1.bf16.msra.mxu0 0
      %1138 = vmatprep.subr.bf16.mxu0 0
      %1139 = vmatpush1.bf16.msra.mxu0 0
      %1140 = vmatprep.subr.bf16.mxu0 0
      %1141 = vmatpush1.bf16.msra.mxu0 0
      %1142 = vmatprep.subr.bf16.mxu0 0
      %1143 = vmatpush1.bf16.msra.mxu0 %v1126
      %1144 = vmatprep.subr.bf16.mxu0 0
      %1145 = vmatpush2.bf16.msra.mxu0 0
      %1146 = vmatprep.subr.bf16.mxu0 0
      %1147 = vmatpush2.bf16.msra.mxu0 0
      %1148 = vmatprep.subr.bf16.mxu0 0
      %1149 = vmatpush2.bf16.msra.mxu0 0
      %1150 = vmatprep.subr.bf16.mxu0 0
      %1151 = vmatpush2.bf16.msra.mxu0 0
      %1152 = vmatprep.subr.bf16.mxu0 0
      %1153 = vmatpush2.bf16.msra.mxu0 0
      %1154 = vmatprep.subr.bf16.mxu0 0
      %1155 = vmatpush2.bf16.msra.mxu0 0
      %1156 = vmatprep.subr.bf16.mxu0 0
      %1157 = vmatpush2.bf16.msra.mxu0 0
      %1158 = vmatprep.subr.bf16.mxu0 0
      %1159 = vmatpush2.bf16.msra.mxu0 0
      %1160 = vmatprep.mubr.bf16.mxu0 0
      %1161 = vmatmul.mubr.bf16.gmra.mxu0 %v1122
      %v1162 = vpop.f32.mrf.mxu0
      %v1163 = vadd.f32 0.0, %v1162
      %v1164 = vpop.f32.mrf.mxu0
      %v1165 = vpop.f32.mrf.mxu0
      %v1166 = vpop.f32.mrf.mxu0
      %1167 = vdwg.mxu0
      %1168 = vrot.lane.b32.xlu0 %v853, 64
      %v1169 = vpop.permute.xlu0 %1168
      %v1171 = vsel %vm859, %v1116, 0
      %v1174 = vsel %vm1124, %v1169, 0
      %1176 = vmatprep.subr.bf16.mxu0 0
      %1177 = vmatpush1.bf16.msra.mxu0 0
      %1178 = vmatprep.subr.bf16.mxu0 0
      %1179 = vmatpush1.bf16.msra.mxu0 0
      %1180 = vmatprep.subr.bf16.mxu0 0
      %1181 = vmatpush1.bf16.msra.mxu0 0
      %1182 = vmatprep.subr.bf16.mxu0 0
      %1183 = vmatpush1.bf16.msra.mxu0 0
      %1184 = vmatprep.subr.bf16.mxu0 0
      %1185 = vmatpush1.bf16.msra.mxu0 0
      %1186 = vmatprep.subr.bf16.mxu0 0
      %1187 = vmatpush1.bf16.msra.mxu0 0
      %1188 = vmatprep.subr.bf16.mxu0 0
      %1189 = vmatpush1.bf16.msra.mxu0 0
      %1190 = vmatprep.subr.bf16.mxu0 0
      %1191 = vmatpush1.bf16.msra.mxu0 %v1174
      %1192 = vmatprep.subr.bf16.mxu0 0
      %1193 = vmatpush2.bf16.msra.mxu0 0
      %1194 = vmatprep.subr.bf16.mxu0 0
      %1195 = vmatpush2.bf16.msra.mxu0 0
      %1196 = vmatprep.subr.bf16.mxu0 0
      %1197 = vmatpush2.bf16.msra.mxu0 0
      %1198 = vmatprep.subr.bf16.mxu0 0
      %1199 = vmatpush2.bf16.msra.mxu0 0
      %1200 = vmatprep.subr.bf16.mxu0 0
      %1201 = vmatpush2.bf16.msra.mxu0 0
      %1202 = vmatprep.subr.bf16.mxu0 0
      %1203 = vmatpush2.bf16.msra.mxu0 0
      %1204 = vmatprep.subr.bf16.mxu0 0
      %1205 = vmatpush2.bf16.msra.mxu0 0
      %1206 = vmatprep.subr.bf16.mxu0 0
      %1207 = vmatpush2.bf16.msra.mxu0 0
      %1208 = vmatprep.mubr.bf16.mxu0 0
      %1209 = vmatmul.mubr.bf16.gmra.mxu0 %v1171
      %v1210 = vpop.f32.mrf.mxu0
      %v1211 = vadd.f32 0.0, %v1210
      %v1212 = vpop.f32.mrf.mxu0
      %v1213 = vpop.f32.mrf.mxu0
      %v1214 = vpop.f32.mrf.mxu0
      %1215 = vdwg.mxu0
      %1216 = vrot.lane.b32.xlu0 %v854, 64
      %v1217 = vpop.permute.xlu0 %1216
      %v1219 = vsel %vm859, %v1117, 0
      %v1222 = vsel %vm1124, %v1217, 0
      %1224 = vmatprep.subr.bf16.mxu0 0
      %1225 = vmatpush1.bf16.msra.mxu0 0
      %1226 = vmatprep.subr.bf16.mxu0 0
      %1227 = vmatpush1.bf16.msra.mxu0 0
      %1228 = vmatprep.subr.bf16.mxu0 0
      %1229 = vmatpush1.bf16.msra.mxu0 0
      %1230 = vmatprep.subr.bf16.mxu0 0
      %1231 = vmatpush1.bf16.msra.mxu0 0
      %1232 = vmatprep.subr.bf16.mxu0 0
      %1233 = vmatpush1.bf16.msra.mxu0 0
      %1234 = vmatprep.subr.bf16.mxu0 0
      %1235 = vmatpush1.bf16.msra.mxu0 0
      %1236 = vmatprep.subr.bf16.mxu0 0
      %1237 = vmatpush1.bf16.msra.mxu0 0
      %1238 = vmatprep.subr.bf16.mxu0 0
      %1239 = vmatpush1.bf16.msra.mxu0 %v1222
      %1240 = vmatprep.subr.bf16.mxu0 0
      %1241 = vmatpush2.bf16.msra.mxu0 0
      %1242 = vmatprep.subr.bf16.mxu0 0
      %1243 = vmatpush2.bf16.msra.mxu0 0
      %1244 = vmatprep.subr.bf16.mxu0 0
      %1245 = vmatpush2.bf16.msra.mxu0 0
      %1246 = vmatprep.subr.bf16.mxu0 0
      %1247 = vmatpush2.bf16.msra.mxu0 0
      %1248 = vmatprep.subr.bf16.mxu0 0
      %1249 = vmatpush2.bf16.msra.mxu0 0
      %1250 = vmatprep.subr.bf16.mxu0 0
      %1251 = vmatpush2.bf16.msra.mxu0 0
      %1252 = vmatprep.subr.bf16.mxu0 0
      %1253 = vmatpush2.bf16.msra.mxu0 0
      %1254 = vmatprep.subr.bf16.mxu0 0
      %1255 = vmatpush2.bf16.msra.mxu0 0
      %1256 = vmatprep.mubr.bf16.mxu0 0
      %1257 = vmatmul.mubr.bf16.gmra.mxu0 %v1219
      %v1258 = vpop.f32.mrf.mxu0
      %v1259 = vadd.f32 0.0, %v1258
      %v1260 = vpop.f32.mrf.mxu0
      %v1261 = vpop.f32.mrf.mxu0
      %v1262 = vpop.f32.mrf.mxu0
      %1263 = vdwg.mxu0
      %1264 = vrot.lane.b32.xlu0 %v855, 64
      %v1265 = vpop.permute.xlu0 %1264
      %v1267 = vsel %vm859, %v1118, 0
      %v1270 = vsel %vm1124, %v1265, 0
      %1272 = vmatprep.subr.bf16.mxu0 0
      %1273 = vmatpush1.bf16.msra.mxu0 0
      %1274 = vmatprep.subr.bf16.mxu0 0
      %1275 = vmatpush1.bf16.msra.mxu0 0
      %1276 = vmatprep.subr.bf16.mxu0 0
      %1277 = vmatpush1.bf16.msra.mxu0 0
      %1278 = vmatprep.subr.bf16.mxu0 0
      %1279 = vmatpush1.bf16.msra.mxu0 0
      %1280 = vmatprep.subr.bf16.mxu0 0
      %1281 = vmatpush1.bf16.msra.mxu0 0
      %1282 = vmatprep.subr.bf16.mxu0 0
      %1283 = vmatpush1.bf16.msra.mxu0 0
      %1284 = vmatprep.subr.bf16.mxu0 0
      %1285 = vmatpush1.bf16.msra.mxu0 0
      %1286 = vmatprep.subr.bf16.mxu0 0
      %1287 = vmatpush1.bf16.msra.mxu0 %v1270
      %1288 = vmatprep.subr.bf16.mxu0 0
      %1289 = vmatpush2.bf16.msra.mxu0 0
      %1290 = vmatprep.subr.bf16.mxu0 0
      %1291 = vmatpush2.bf16.msra.mxu0 0
      %1292 = vmatprep.subr.bf16.mxu0 0
      %1293 = vmatpush2.bf16.msra.mxu0 0
      %1294 = vmatprep.subr.bf16.mxu0 0
      %1295 = vmatpush2.bf16.msra.mxu0 0
      %1296 = vmatprep.subr.bf16.mxu0 0
      %1297 = vmatpush2.bf16.msra.mxu0 0
      %1298 = vmatprep.subr.bf16.mxu0 0
      %1299 = vmatpush2.bf16.msra.mxu0 0
      %1300 = vmatprep.subr.bf16.mxu0 0
      %1301 = vmatpush2.bf16.msra.mxu0 0
      %1302 = vmatprep.subr.bf16.mxu0 0
      %1303 = vmatpush2.bf16.msra.mxu0 0
      %1304 = vmatprep.mubr.bf16.mxu0 0
      %1305 = vmatmul.mubr.bf16.gmra.mxu0 %v1267
      %v1306 = vpop.f32.mrf.mxu0
      %v1307 = vadd.f32 0.0, %v1306
      %v1308 = vpop.f32.mrf.mxu0
      %v1309 = vpop.f32.mrf.mxu0
      %v1310 = vpop.f32.mrf.mxu0
      %1311 = vdwg.mxu0
      %1313 = vrot.lane.b32.xlu0 %v1211, 8
      %v1314 = vpop.permute.xlu0 %1313
      %1317 = vrot.lane.b32.xlu0 %v1259, 16
      %v1318 = vpop.permute.xlu0 %1317
      %1321 = vrot.lane.b32.xlu0 %v1307, 24
      %v1322 = vpop.permute.xlu0 %1321
      %v1324 = vsel %vm859, %v1163, %v1314
      %vm1325 = vcmask 130048
      %v1326 = vsel %vm1325, %v1324, %v1318
      %vm1327 = vcmask 195584
      %v1328 = vsel %vm1327, %v1326, %v1322
      %v1329 = vpack.c.bf16 %v1328, %v1328
      %v1330 = vld [vmem:[%s728] sm:$0xf]
      %v1331 = vld [vmem:[%s728 + $0x4] sm:$0xf]
      %v1332 = vld [vmem:[%s728 + $0x8] sm:$0xf]
      %v1333 = vld [vmem:[%s728 + $0xc] sm:$0xf]
      %v1334 = vld [vmem:[%s731] sm:$0x1]
      %v1336 = vlaneseq
      %v1337 = vshrl.u32 %v1336, 7
      %v1338 = vsub.s32 0, %v1337
      %v1339 = vrot.slane %v1334, %v1338
      %v1345 = vunpack.c.l.b16 %v1330
      %v1346 = vunpack.c.l.b16 %v1331
      %v1347 = vunpack.c.l.b16 %v1332
      %v1348 = vunpack.c.l.b16 %v1333
      %v1349 = vpack.c.b16 %v1346, %v1345
      %v1350 = vpack.c.b16 %v1348, %v1347
      %v1354 = vsel %vm798, %v1329, 0
      %1356 = vmatprep.subr.bf16.mxu0 0
      %1357 = vmatpush1.bf16.msra.mxu0 0
      %1358 = vmatprep.subr.bf16.mxu0 0
      %1359 = vmatpush1.bf16.msra.mxu0 0
      %1360 = vmatprep.subr.bf16.mxu0 0
      %1361 = vmatpush1.bf16.msra.mxu0 0
      %1362 = vmatprep.subr.bf16.mxu0 0
      %1363 = vmatpush1.bf16.msra.mxu0 0
      %1364 = vmatprep.subr.bf16.mxu0 0
      %1365 = vmatpush1.bf16.msra.mxu0 0
      %1366 = vmatprep.subr.bf16.mxu0 0
      %1367 = vmatpush1.bf16.msra.mxu0 0
      %1368 = vmatprep.subr.bf16.mxu0 0
      %1369 = vmatpush1.bf16.msra.mxu0 %v1350
      %1370 = vmatprep.subr.bf16.mxu0 0
      %1371 = vmatpush1.bf16.msra.mxu0 %v1349
      %1372 = vmatprep.subr.bf16.mxu0 0
      %1373 = vmatpush2.bf16.msra.mxu0 0
      %1374 = vmatprep.subr.bf16.mxu0 0
      %1375 = vmatpush2.bf16.msra.mxu0 0
      %1376 = vmatprep.subr.bf16.mxu0 0
      %1377 = vmatpush2.bf16.msra.mxu0 0
      %1378 = vmatprep.subr.bf16.mxu0 0
      %1379 = vmatpush2.bf16.msra.mxu0 0
      %1380 = vmatprep.subr.bf16.mxu0 0
      %1381 = vmatpush2.bf16.msra.mxu0 0
      %1382 = vmatprep.subr.bf16.mxu0 0
      %1383 = vmatpush2.bf16.msra.mxu0 0
      %1384 = vmatprep.subr.bf16.mxu0 0
      %1385 = vmatpush2.bf16.msra.mxu0 0
      %1386 = vmatprep.subr.bf16.mxu0 0
      %1387 = vmatpush2.bf16.msra.mxu0 0
      %1388 = vmatprep.mubr.bf16.mxu0 0
      %1389 = vmatmul.mubr.bf16.gmra.mxu0 %v1354
      %v1390 = vpop.f32.mrf.mxu0
      %v1391 = vadd.f32 %v1339, %v1390
      %v1392 = vpop.f32.mrf.mxu0
      %v1393 = vpop.f32.mrf.mxu0
      %v1394 = vpop.f32.mrf.mxu0
      %1395 = vdwg.mxu0
      %v1396 = vadd.f32 %v771, %v1391
      %v1397 = vld [vmem:[%s734] sm:$0x1]
      %v1398 = vld [vmem:[%s737] sm:$0x1]
      %v1399 = vsel %vm798, %v1396, 0.0
      %1400 = vadd.xlane.f32.xlu0 %v1399
      %v1401 = vpop.xlane.xlu0 %1400
      %v1402 = vrcp.pop 32.0
      %v1403 = vmul.f32 %v1401, %v1402
      %v1404 = vsub.f32 %v1396, %v1403
      %v1405 = vmul.f32 %v1404, %v1404
      %v1406 = vsel %vm798, %v1405, 0.0
      %1407 = vadd.xlane.f32.xlu0 %v1406
      %v1408 = vpop.xlane.xlu0 %1407
      %v1409 = vmul.f32 %v1408, %v1402
      %v1410 = vadd.f32 %v1409, 1e-05
      %v1411 = vrsqrt.pop %v1410
      %v1412 = vmul.f32 %v1404, %v1411
      %v1414 = vlaneseq
      %v1415 = vshrl.u32 %v1414, 7
      %v1416 = vsub.s32 0, %v1415
      %v1417 = vrot.slane %v1397, %v1416
      %v1419 = vmul.f32 %v1412, %v1417
      %v1421 = vlaneseq
      %v1422 = vshrl.u32 %v1421, 7
      %v1423 = vsub.s32 0, %v1422
      %v1424 = vrot.slane %v1398, %v1423
      %v1426 = vadd.f32 %v1419, %v1424
      %v1427 = vpack.c.bf16 %v1426, %v1426
      %v1428 = vld [vmem:[%s742] sm:$0xf]
      %v1429 = vld [vmem:[%s742 + $0x4] sm:$0xf]
      %v1430 = vld [vmem:[%s742 + $0x8] sm:$0xf]
      %v1431 = vld [vmem:[%s742 + $0xc] sm:$0xf]
      %v1432 = vld [vmem:[%s745] sm:$0x1]
      %v1434 = vlaneseq
      %v1435 = vshrl.u32 %v1434, 7
      %v1436 = vsub.s32 0, %v1435
      %v1437 = vrot.slane %v1432, %v1436
      %v1443 = vunpack.c.l.b16 %v1428
      %v1444 = vunpack.c.l.b16 %v1429
      %v1445 = vunpack.c.l.b16 %v1430
      %v1446 = vunpack.c.l.b16 %v1431
      %v1447 = vpack.c.b16 %v1444, %v1443
      %v1448 = vpack.c.b16 %v1446, %v1445
      %v1452 = vsel %vm798, %v1427, 0
      %1454 = vmatprep.subr.bf16.mxu0 0
      %1455 = vmatpush1.bf16.msra.mxu0 0
      %1456 = vmatprep.subr.bf16.mxu0 0
      %1457 = vmatpush1.bf16.msra.mxu0 0
      %1458 = vmatprep.subr.bf16.mxu0 0
      %1459 = vmatpush1.bf16.msra.mxu0 0
      %1460 = vmatprep.subr.bf16.mxu0 0
      %1461 = vmatpush1.bf16.msra.mxu0 0
      %1462 = vmatprep.subr.bf16.mxu0 0
      %1463 = vmatpush1.bf16.msra.mxu0 0
      %1464 = vmatprep.subr.bf16.mxu0 0
      %1465 = vmatpush1.bf16.msra.mxu0 0
      %1466 = vmatprep.subr.bf16.mxu0 0
      %1467 = vmatpush1.bf16.msra.mxu0 %v1448
      %1468 = vmatprep.subr.bf16.mxu0 0
      %1469 = vmatpush1.bf16.msra.mxu0 %v1447
      %1470 = vmatprep.subr.bf16.mxu0 0
      %1471 = vmatpush2.bf16.msra.mxu0 0
      %1472 = vmatprep.subr.bf16.mxu0 0
      %1473 = vmatpush2.bf16.msra.mxu0 0
      %1474 = vmatprep.subr.bf16.mxu0 0
      %1475 = vmatpush2.bf16.msra.mxu0 0
      %1476 = vmatprep.subr.bf16.mxu0 0
      %1477 = vmatpush2.bf16.msra.mxu0 0
      %1478 = vmatprep.subr.bf16.mxu0 0
      %1479 = vmatpush2.bf16.msra.mxu0 0
      %1480 = vmatprep.subr.bf16.mxu0 0
      %1481 = vmatpush2.bf16.msra.mxu0 0
      %1482 = vmatprep.subr.bf16.mxu0 0
      %1483 = vmatpush2.bf16.msra.mxu0 0
      %1484 = vmatprep.subr.bf16.mxu0 0
      %1485 = vmatpush2.bf16.msra.mxu0 0
      %1486 = vmatprep.mubr.bf16.mxu0 0
      %1487 = vmatmul.mubr.bf16.gmra.mxu0 %v1452
      %v1488 = vpop.f32.mrf.mxu0
      %v1489 = vadd.f32 %v1437, %v1488
      %v1490 = vpop.f32.mrf.mxu0
      %v1491 = vpop.f32.mrf.mxu0
      %v1492 = vpop.f32.mrf.mxu0
      %1493 = vdwg.mxu0
      %v1494 = vmul.f32 %v1489, 0.5
      %v1495 = vmul.f32 %v1489, 0.044715
      %v1496 = vmul.f32 %v1495, %v1489
      %v1497 = vmul.f32 %v1496, %v1489
      %v1498 = vadd.f32 %v1489, %v1497
      %v1499 = vmul.f32 %v1498, 0.7978846
      %v1500 = vtanh.pop %v1499
      %v1501 = vadd.f32 %v1500, 1.0
      %v1502 = vmul.f32 %v1494, %v1501
      %v1503 = vpack.c.bf16 %v1502, %v1502
      %v1504 = vld [vmem:[%s750] sm:$0xf]
      %v1505 = vld [vmem:[%s750 + $0x4] sm:$0xf]
      %v1506 = vld [vmem:[%s750 + $0x8] sm:$0xf]
      %v1507 = vld [vmem:[%s750 + $0xc] sm:$0xf]
      %v1508 = vld [vmem:[%s750 + $0x10] sm:$0xf]
      %v1509 = vld [vmem:[%s750 + $0x14] sm:$0xf]
      %v1510 = vld [vmem:[%s750 + $0x18] sm:$0xf]
      %v1511 = vld [vmem:[%s750 + $0x1c] sm:$0xf]
      %v1512 = vld [vmem:[%s753] sm:$0x1]
      %v1514 = vlaneseq
      %v1515 = vshrl.u32 %v1514, 7
      %v1516 = vsub.s32 0, %v1515
      %v1517 = vrot.slane %v1512, %v1516
      %v1527 = vunpack.c.l.b16 %v1504
      %v1528 = vunpack.c.l.b16 %v1505
      %v1529 = vunpack.c.l.b16 %v1506
      %v1530 = vunpack.c.l.b16 %v1507
      %v1531 = vunpack.c.l.b16 %v1508
      %v1532 = vunpack.c.l.b16 %v1509
      %v1533 = vunpack.c.l.b16 %v1510
      %v1534 = vunpack.c.l.b16 %v1511
      %v1535 = vpack.c.b16 %v1528, %v1527
      %v1536 = vpack.c.b16 %v1530, %v1529
      %v1537 = vpack.c.b16 %v1532, %v1531
      %v1538 = vpack.c.b16 %v1534, %v1533
      %vm1543 = vcmask 523264
      %v1545 = vsel %vm1543, %v1503, 0
      %1547 = vmatprep.subr.bf16.mxu0 0
      %1548 = vmatpush1.bf16.msra.mxu0 0
      %1549 = vmatprep.subr.bf16.mxu0 0
      %1550 = vmatpush1.bf16.msra.mxu0 0
      %1551 = vmatprep.subr.bf16.mxu0 0
      %1552 = vmatpush1.bf16.msra.mxu0 0
      %1553 = vmatprep.subr.bf16.mxu0 0
      %1554 = vmatpush1.bf16.msra.mxu0 0
      %1555 = vmatprep.subr.bf16.mxu0 0
      %1556 = vmatpush1.bf16.msra.mxu0 %v1538
      %1557 = vmatprep.subr.bf16.mxu0 0
      %1558 = vmatpush1.bf16.msra.mxu0 %v1537
      %1559 = vmatprep.subr.bf16.mxu0 0
      %1560 = vmatpush1.bf16.msra.mxu0 %v1536
      %1561 = vmatprep.subr.bf16.mxu0 0
      %1562 = vmatpush1.bf16.msra.mxu0 %v1535
      %1563 = vmatprep.subr.bf16.mxu0 0
      %1564 = vmatpush2.bf16.msra.mxu0 0
      %1565 = vmatprep.subr.bf16.mxu0 0
      %1566 = vmatpush2.bf16.msra.mxu0 0
      %1567 = vmatprep.subr.bf16.mxu0 0
      %1568 = vmatpush2.bf16.msra.mxu0 0
      %1569 = vmatprep.subr.bf16.mxu0 0
      %1570 = vmatpush2.bf16.msra.mxu0 0
      %1571 = vmatprep.subr.bf16.mxu0 0
      %1572 = vmatpush2.bf16.msra.mxu0 0
      %1573 = vmatprep.subr.bf16.mxu0 0
      %1574 = vmatpush2.bf16.msra.mxu0 0
      %1575 = vmatprep.subr.bf16.mxu0 0
      %1576 = vmatpush2.bf16.msra.mxu0 0
      %1577 = vmatprep.subr.bf16.mxu0 0
      %1578 = vmatpush2.bf16.msra.mxu0 0
      %1579 = vmatprep.mubr.bf16.mxu0 0
      %1580 = vmatmul.mubr.bf16.gmra.mxu0 %v1545
      %v1581 = vpop.f32.mrf.mxu0
      %v1582 = vadd.f32 %v1517, %v1581
      %v1583 = vpop.f32.mrf.mxu0
      %v1584 = vpop.f32.mrf.mxu0
      %v1585 = vpop.f32.mrf.mxu0
      %1586 = vdwg.mxu0
      %v1587 = vadd.f32 %v1426, %v1582
      %v1588 = vld [vmem:[%s756] sm:$0x1]
      %v1589 = vld [vmem:[%s759] sm:$0x1]
      %v1590 = vsel %vm798, %v1587, 0.0
      %1591 = vadd.xlane.f32.xlu0 %v1590
      %v1592 = vpop.xlane.xlu0 %1591
      %v1593 = vmul.f32 %v1592, %v1402
      %v1594 = vsub.f32 %v1587, %v1593
      %v1595 = vmul.f32 %v1594, %v1594
      %v1596 = vsel %vm798, %v1595, 0.0
      %1597 = vadd.xlane.f32.xlu0 %v1596
      %v1598 = vpop.xlane.xlu0 %1597
      %v1599 = vmul.f32 %v1598, %v1402
      %v1600 = vadd.f32 %v1599, 1e-05
      %v1601 = vrsqrt.pop %v1600
      %v1602 = vmul.f32 %v1594, %v1601
      %v1604 = vlaneseq
      %v1605 = vshrl.u32 %v1604, 7
      %v1606 = vsub.s32 0, %v1605
      %v1607 = vrot.slane %v1588, %v1606
      %v1609 = vmul.f32 %v1602, %v1607
      %v1611 = vlaneseq
      %v1612 = vshrl.u32 %v1611, 7
      %v1613 = vsub.s32 0, %v1612
      %v1614 = vrot.slane %v1589, %v1613
      %v1616 = vadd.f32 %v1609, %v1614
      %1617 = vst.msk [vmem:[#allocation2] sm:$0xff] %vm798, %v1616
      %p1618 = scmp.eq.s32.totalorder %s33, 1
      // Predicated region
      $region93: #{encoder_forward_pallas.1} parent=87 // pred_check
        %p1619 = pneg %p1618
      $region94: #{encoder_forward_pallas.1} parent=87 // pred_check_branch
        %1621 = sbr.rel (%p1619) target = $region96
      $region95: #{encoder_forward_pallas.1} parent=87 // pred_region
        %v1622 = vpack.c.bf16 %v1616, %v1616
        %v1623 = vld [vmem:[%s14] sm:$0xf]
        %v1624 = vld [vmem:[%s14 + $0x4] sm:$0xf]
        %v1625 = vld [vmem:[%s14 + $0x8] sm:$0xf]
        %v1626 = vld [vmem:[%s14 + $0xc] sm:$0xf]
        %v1627 = vld [vmem:[%s15] sm:$0x1]
        %v1632 = vunpack.c.l.b16 %v1623
        %v1633 = vunpack.c.l.b16 %v1624
        %v1634 = vunpack.c.l.b16 %v1625
        %v1635 = vunpack.c.l.b16 %v1626
        %v1636 = vpack.c.b16 %v1633, %v1632
        %v1637 = vpack.c.b16 %v1635, %v1634
        %v1641 = vsel %vm798, %v1622, 0
        %1643 = vmatprep.subr.bf16.mxu0 0
        %1644 = vmatpush1.bf16.msra.mxu0 0
        %1645 = vmatprep.subr.bf16.mxu0 0
        %1646 = vmatpush1.bf16.msra.mxu0 0
        %1647 = vmatprep.subr.bf16.mxu0 0
        %1648 = vmatpush1.bf16.msra.mxu0 0
        %1649 = vmatprep.subr.bf16.mxu0 0
        %1650 = vmatpush1.bf16.msra.mxu0 0
        %1651 = vmatprep.subr.bf16.mxu0 0
        %1652 = vmatpush1.bf16.msra.mxu0 0
        %1653 = vmatprep.subr.bf16.mxu0 0
        %1654 = vmatpush1.bf16.msra.mxu0 0
        %1655 = vmatprep.subr.bf16.mxu0 0
        %1656 = vmatpush1.bf16.msra.mxu0 %v1637
        %1657 = vmatprep.subr.bf16.mxu0 0
        %1658 = vmatpush1.bf16.msra.mxu0 %v1636
        %1659 = vmatprep.subr.bf16.mxu0 0
        %1660 = vmatpush2.bf16.msra.mxu0 0
        %1661 = vmatprep.subr.bf16.mxu0 0
        %1662 = vmatpush2.bf16.msra.mxu0 0
        %1663 = vmatprep.subr.bf16.mxu0 0
        %1664 = vmatpush2.bf16.msra.mxu0 0
        %1665 = vmatprep.subr.bf16.mxu0 0
        %1666 = vmatpush2.bf16.msra.mxu0 0
        %1667 = vmatprep.subr.bf16.mxu0 0
        %1668 = vmatpush2.bf16.msra.mxu0 0
        %1669 = vmatprep.subr.bf16.mxu0 0
        %1670 = vmatpush2.bf16.msra.mxu0 0
        %1671 = vmatprep.subr.bf16.mxu0 0
        %1672 = vmatpush2.bf16.msra.mxu0 0
        %1673 = vmatprep.subr.bf16.mxu0 0
        %1674 = vmatpush2.bf16.msra.mxu0 0
        %1675 = vmatprep.mubr.bf16.mxu0 0
        %1676 = vmatmul.mubr.bf16.gmra.mxu0 %v1641
        %v1677 = vpop.f32.mrf.mxu0
        %v1678 = vadd.f32 %v1627, %v1677
        %v1679 = vpop.f32.mrf.mxu0
        %v1680 = vpop.f32.mrf.mxu0
        %v1681 = vpop.f32.mrf.mxu0
        %1682 = vdwg.mxu0
        %v1683 = vtanh.pop %v1678
        %v1684 = vld [vmem:[%s16] sm:$0x1]
        %v1685 = vmul.f32 %v1683, %v1684
        %vm1686 = vcmask 516096
        %v1687 = vsel %vm1686, %v1685, 0.0
        %1688 = vadd.xlane.f32.xlu0 %v1687
        %v1689 = vpop.xlane.xlu0 %1688
        %vm1690 = vcmask 0
        %1691 = vst.msk [vmem:[%s762] sm:$0x1] %vm1690, %v1689
      $region96: #{encoder_forward_pallas.1} parent=87 // pred_fallthru
        _
      %p1692 = scmp.lt.s32.totalorder %s32, 1
      %s1693 = scalar_select %p1692, %s32, 1
      %s1694 = scalar_lea.vmem %s17, %s1693
      // Predicated region
      $region97: #{encoder_forward_pallas.1} parent=87 // pred_check
        %p1695 = pneg %p485
      $region98: #{encoder_forward_pallas.1} parent=87 // pred_check_branch
        %1697 = sbr.rel (%p1695) target = $region100
      $region99: #{encoder_forward_pallas.1} parent=87 // pred_region
        _
      $region100: #{encoder_forward_pallas.1} parent=87 // pred_fallthru
        _
    $region88: #{encoder_forward_pallas.1} parent=5 // pred_fallthru
      _
    %p1698 = scmp.le.s32.totalorder 2, %s23
    // Predicated region
    $region101: #{encoder_forward_pallas.1} parent=5 // pred_check
      %p1699 = pneg %p1698
    $region102: #{encoder_forward_pallas.1} parent=5 // pred_check_branch
      %1701 = sbr.rel (%p1699) target = $region104
    $region103: #{encoder_forward_pallas.1} parent=5 // pred_region
      %s1702 = ssub.s32 %s23, 2
      // Predicated region
      $region105: #{encoder_forward_pallas.1} parent=103 // pred_check
        %p1703 = pneg %p491
      $region106: #{encoder_forward_pallas.1} parent=103 // pred_check_branch
        %1705 = sbr.rel (%p1703) target = $region108
      $region107: #{encoder_forward_pallas.1} parent=103 // pred_region
        %p1706 = scmp.lt.s32.totalorder %s34, 1
        %s1707 = scalar_select %p1706, %s34, 1
        %s1708 = scalar_lea.vmem %s17, %s1707
      $region108: #{encoder_forward_pallas.1} parent=103 // pred_fallthru
        _
    $region104: #{encoder_forward_pallas.1} parent=5 // pred_fallthru
      _
  $region6: #{encoder_forward_pallas.1} parent=0 // loop_footer
    %s27 = sadd.s32 1, %s23
  $region7: #{encoder_forward_pallas.1} parent=0 // loop_footer_branch
    %22 = sbr.rel target = $region3
  $region8: #{encoder_forward_pallas.1} parent=0 // loop_exit
    _

</llo_original>
